<compile_context>
chip_gen: v5e
topology: v5e:2x2
jax: 0.10.0
libtpu: 0.0.40
codegen_flags: <defaults>
</compile_context>

<pallas_src>
import numpy as np
import jax
import jax.numpy as jnp
from jax import lax
from jax.experimental import pallas as pl
from jax.experimental.pallas import tpu as pltpu

# ---------------- model hyperparameters (from the PyTorch module) ----------------
INPUT_DIM = 1
HIDDEN_DIM = 36
NUM_LAYERS = 2           # hard-wired to 2 below (layer1, layer2)
OUTPUT_DIM = 1

# ---------------- padded sizes for TPU tiling ----------------
BP = 8                   # padded batch (sublane multiple)
HP = 64                  # padded hidden / per-gate lane width (36 -> 64)
G4 = 4 * HP              # concatenated gates (i, f, g, o), each HP wide -> 256
OP = 128                 # padded output feature (lane-dense output)


def _lstm_fc_kernel(x_ref,                 # (T*BP, 1)   time-major input (flattened)
                    wx1_ref,               # (1, G4)     layer-1 input weight row (D == 1)
                    whh1_ref,              # (HP, G4)    layer-1 recurrent weight
                    b1_ref,                # (1, G4)     layer-1 bias (b_ih + b_hh)
                    wih2_ref,              # (HP, G4)    layer-2 input weight (vs h1)
                    whh2_ref,              # (HP, G4)    layer-2 recurrent weight (vs h2)
                    b2_ref,                # (1, G4)     layer-2 bias (b_ih + b_hh)
                    wfc_ref,               # (HP, OP)    fc weight
                    bfc_ref,               # (1, OP)     fc bias
                    out_ref,               # (BP, OP)
                    xb1_ref):              # scratch (T*BP, G4): hoisted input proj.
    T = x_ref.shape[0] // BP

    # ---- prologue: h-independent layer-1 input projection for ALL timesteps ----
    # (T*BP, 1) * (1, G4) + (1, G4) -> (T*BP, G4); pure VPU lane/sublane broadcast.
    xb1_ref[...] = x_ref[...] * wx1_ref[...] + b1_ref[...]

    # Hoist small broadcasts out of the time loop (JAX does not CSE broadcast_in_dim).
    b2b = jnp.broadcast_to(b2_ref[...], (BP, G4))

    def sig(v):
        # Explicit single-EUP sigmoid (identical to logistic): 0.5*tanh(0.5 v)+0.5.
        return 0.5 * jnp.tanh(0.5 * v) + 0.5

    def cell(gates, c):
        # gates: (BP, G4); PyTorch gate order i, f, g, o, each HP lanes wide.
        if_gates = sig(gates[:, :2 * HP])          # i|f in ONE EUP pass
        i = if_gates[:, :HP]
        f = if_gates[:, HP:]
        g = jnp.tanh(gates[:, 2 * HP:3 * HP])
        o = sig(gates[:, 3 * HP:])
        c_new = f * c + i * g
        h_new = o * jnp.tanh(c_new)
        return h_new, c_new

    def step(t, carry):
        h1, c1, h2, c2 = carry
        # --- layer-2 partial that only depends on h2(t-1): issue it first so the
        #     MXU work overlaps layer-1's matmul/cell of the same step; fold in b2.
        g2 = b2b + jnp.dot(h2, whh2_ref[...], preferred_element_type=jnp.float32)
        # --- layer 1: input projection was hoisted; only the K=64 recurrent matmul
        #     remains on the serial chain.
        row = pl.multiple_of(t * BP, BP)
        g1 = (xb1_ref[pl.ds(row, BP), :]
              + jnp.dot(h1, whh1_ref[...], preferred_element_type=jnp.float32))
        h1, c1 = cell(g1, c1)
        # --- layer 2: remaining K=64 partial against the fresh h1(t), then cell2.
        g2 = g2 + jnp.dot(h1, wih2_ref[...], preferred_element_type=jnp.float32)
        h2, c2 = cell(g2, c2)
        return (h1, c1, h2, c2)

    z = jnp.zeros((BP, HP), jnp.float32)
    # Full unroll only while T is small (scheduler overlap of layer-1(t+1) with
    # layer-2(t)); cap the unroll factor for longer sequences.
    unroll = True if T <= 16 else 8
    _, _, h2, _ = lax.fori_loop(0, T, step, (z, z, z, z), unroll=unroll)

    # fc head on the last timestep's top-layer hidden state (lane-dense output).
    out_ref[...] = (jnp.dot(h2, wfc_ref[...], preferred_element_type=jnp.float32)
                    + bfc_ref[...])


def lstm_forward_pallas(x, packed):
    """x: (B, T, INPUT_DIM) float32, batch_first.  Returns (B, OUTPUT_DIM)."""
    B, T, D = x.shape
    assert D == INPUT_DIM and B <= BP
    # time-major, batch padded to 8 sublanes, then flattened to (T*BP, 1) so all
    # in-kernel ops stay 2-D.
    xp = jnp.zeros((T, BP, 1), jnp.float32)
    xp = xp.at[:, :B, :].set(jnp.transpose(x, (1, 0, 2)))
    xp = xp.reshape(T * BP, 1)

    out_padded = pl.pallas_call(
        _lstm_fc_kernel,
        out_shape=jax.ShapeDtypeStruct((BP, OP), jnp.float32),
        in_specs=[pl.BlockSpec(memory_space=pltpu.MemorySpace.VMEM)] * 9,
        out_specs=pl.BlockSpec(memory_space=pltpu.MemorySpace.VMEM),
        scratch_shapes=[pltpu.VMEM((T * BP, G4), jnp.float32)],
    )(xp,
      packed["wx1"], packed["whh1"], packed["b1"],
      packed["wih2"], packed["whh2"], packed["b2"],
      packed["wfc"], packed["bfc"])

    return out_padded[:B, :OUTPUT_DIM]


# ---------------- deterministic parameter construction ----------------
def make_params(key):
    """PyTorch-shaped LSTM/Linear params, uniform(-1/sqrt(H), 1/sqrt(H))."""
    k = 1.0 / np.sqrt(HIDDEN_DIM)
    names_shapes = [
        ("weight_ih_l0", (4 * HIDDEN_DIM, INPUT_DIM)),
        ("weight_hh_l0", (4 * HIDDEN_DIM, HIDDEN_DIM)),
        ("bias_ih_l0", (4 * HIDDEN_DIM,)),
        ("bias_hh_l0", (4 * HIDDEN_DIM,)),
        ("weight_ih_l1", (4 * HIDDEN_DIM, HIDDEN_DIM)),
        ("weight_hh_l1", (4 * HIDDEN_DIM, HIDDEN_DIM)),
        ("bias_ih_l1", (4 * HIDDEN_DIM,)),
        ("bias_hh_l1", (4 * HIDDEN_DIM,)),
        ("fc_weight", (OUTPUT_DIM, HIDDEN_DIM)),
        ("fc_bias", (OUTPUT_DIM,)),
    ]
    params = {}
    keys = jax.random.split(key, len(names_shapes))
    for kk, (name, shape) in zip(keys, names_shapes):
        params[name] = jax.random.uniform(kk, shape, jnp.float32, -k, k)
    return params


def _scatter_gates(dst, W):
    """W: torch-style (4H, in_dim). Place each gate block, transposed, at
    dst[0:in_dim, g*HP : g*HP+H]."""
    W = np.asarray(W, np.float32)
    in_dim = W.shape[1]
    H = HIDDEN_DIM
    for g in range(4):
        dst[:in_dim, g * HP:g * HP + H] = W[g * H:(g + 1) * H, :].T
    return dst


def _pack_gate_bias(b_ih, b_hh):
    b = np.asarray(b_ih, np.float32) + np.asarray(b_hh, np.float32)
    out = np.zeros((1, G4), np.float32)
    H = HIDDEN_DIM
    for g in range(4):
        out[0, g * HP:g * HP + H] = b[g * H:(g + 1) * H]
    return out


def pack_params(params):
    # layer 1
    wx1 = _scatter_gates(np.zeros((1, G4), np.float32), params["weight_ih_l0"])
    whh1 = _scatter_gates(np.zeros((HP, G4), np.float32), params["weight_hh_l0"])
    b1 = _pack_gate_bias(params["bias_ih_l0"], params["bias_hh_l0"])
    # layer 2 (kept as two separate K=64 weights so the h2-dependent partial can
    # issue before cell1 and no per-step concat is needed)
    wih2 = _scatter_gates(np.zeros((HP, G4), np.float32), params["weight_ih_l1"])
    whh2 = _scatter_gates(np.zeros((HP, G4), np.float32), params["weight_hh_l1"])
    b2 = _pack_gate_bias(params["bias_ih_l1"], params["bias_hh_l1"])
    # fc head
    wfc = np.zeros((HP, OP), np.float32)
    wfc[:HIDDEN_DIM, :OUTPUT_DIM] = np.asarray(params["fc_weight"], np.float32).T
    bfc = np.zeros((1, OP), np.float32)
    bfc[0, :OUTPUT_DIM] = np.asarray(params["fc_bias"], np.float32)

    return {k: jnp.asarray(v) for k, v in dict(
        wx1=wx1, whh1=whh1, b1=b1, wih2=wih2, whh2=whh2, b2=b2,
        wfc=wfc, bfc=bfc).items()}


# ---------------- pure-JAX reference (for correctness check) ----------------
def lstm_forward_ref(x, params):
    B, T, _ = x.shape
    H = HIDDEN_DIM

    def one_layer(inp, wih, whh, bih, bhh):
        h = jnp.zeros((B, H), jnp.float32)
        c = jnp.zeros((B, H), jnp.float32)
        outs = []
        for t in range(T):
            gates = inp[:, t, :] @ wih.T + h @ whh.T + bih + bhh
            i = jax.nn.sigmoid(gates[:, 0 * H:1 * H])
            f = jax.nn.sigmoid(gates[:, 1 * H:2 * H])
            g = jnp.tanh(gates[:, 2 * H:3 * H])
            o = jax.nn.sigmoid(gates[:, 3 * H:4 * H])
            c = f * c + i * g
            h = o * jnp.tanh(c)
            outs.append(h)
        return jnp.stack(outs, axis=1)

    out1 = one_layer(x, params["weight_ih_l0"], params["weight_hh_l0"],
                     params["bias_ih_l0"], params["bias_hh_l0"])
    out2 = one_layer(out1, params["weight_ih_l1"], params["weight_hh_l1"],
                     params["bias_ih_l1"], params["bias_hh_l1"])
    return out2[:, -1, :] @ params["fc_weight"].T + params["fc_bias"]


if __name__ == "__main__":
    key = jax.random.PRNGKey(0)
    kp, kx = jax.random.split(key)

    params = make_params(kp)
    packed = pack_params(params)

    B, T = 2, 8
    x = jax.random.normal(kx, (B, T, INPUT_DIM), jnp.float32)

    out = lstm_forward_pallas(x, packed)
    out = jax.block_until_ready(out)

    ref = lstm_forward_ref(x, params)
    np.testing.assert_allclose(np.asarray(out), np.asarray(ref), rtol=3e-4, atol=1e-4)

    print("KERNEL_OK")
</pallas_src>

<mosaic_0001>
module attributes {stable_mosaic.version = 11 : i64} {
  func.func @_lstm_fc_kernel(%arg0: memref<64x1xf32, #tpu.memory_space<vmem>>, %arg1: memref<1x256xf32, #tpu.memory_space<vmem>>, %arg2: memref<64x256xf32, #tpu.memory_space<vmem>>, %arg3: memref<1x256xf32, #tpu.memory_space<vmem>>, %arg4: memref<64x256xf32, #tpu.memory_space<vmem>>, %arg5: memref<64x256xf32, #tpu.memory_space<vmem>>, %arg6: memref<1x256xf32, #tpu.memory_space<vmem>>, %arg7: memref<64x128xf32, #tpu.memory_space<vmem>>, %arg8: memref<1x128xf32, #tpu.memory_space<vmem>>, %arg9: memref<8x128xf32, #tpu.memory_space<vmem>>, %arg10: memref<64x256xf32, #tpu.memory_space<vmem>>) attributes {dimension_semantics = [], scalar_prefetch = 0 : i64, scratch_operands = 1 : i64, tpu.core_type = #tpu.core_type<tc>} {
    %c0 = arith.constant 0 : index
    %c0_0 = arith.constant 0 : index
    %0 = vector.load %arg0[%c0, %c0_0] : memref<64x1xf32, #tpu.memory_space<vmem>>, vector<64x1xf32>
    %c0_1 = arith.constant 0 : index
    %c0_2 = arith.constant 0 : index
    %1 = vector.load %arg1[%c0_1, %c0_2] : memref<1x256xf32, #tpu.memory_space<vmem>>, vector<1x256xf32>
    %2 = vector.broadcast %0 : vector<64x1xf32> to vector<64x256xf32>
    %3 = vector.broadcast %1 : vector<1x256xf32> to vector<64x256xf32>
    %4 = arith.mulf %2, %3 : vector<64x256xf32>
    %c0_3 = arith.constant 0 : index
    %c0_4 = arith.constant 0 : index
    %5 = vector.load %arg3[%c0_3, %c0_4] : memref<1x256xf32, #tpu.memory_space<vmem>>, vector<1x256xf32>
    %6 = vector.broadcast %5 : vector<1x256xf32> to vector<64x256xf32>
    %7 = arith.addf %4, %6 : vector<64x256xf32>
    %c0_5 = arith.constant 0 : index
    %c0_6 = arith.constant 0 : index
    %8 = vector.load %arg10[%c0_5, %c0_6] : memref<64x256xf32, #tpu.memory_space<vmem>>, vector<64x256xf32>
    tpu.vector_store %arg10[%c0_5, %c0_6], %7 {strides = array<i32>} : memref<64x256xf32, #tpu.memory_space<vmem>>, vector<64x256xf32>,
    %c0_7 = arith.constant 0 : index
    %c0_8 = arith.constant 0 : index
    %9 = vector.load %arg6[%c0_7, %c0_8] : memref<1x256xf32, #tpu.memory_space<vmem>>, vector<1x256xf32>
    %10 = vector.shape_cast %9 : vector<1x256xf32> to vector<1x256xf32>
    %11 = vector.broadcast %10 : vector<1x256xf32> to vector<8x256xf32>
    %cst = arith.constant 0.000000e+00 : f32
    %12 = vector.broadcast %cst : f32 to vector<8x64xf32>
    %c0_i32 = arith.constant 0 : i32
    %c0_9 = arith.constant 0 : index
    %c0_10 = arith.constant 0 : index
    %13 = vector.load %arg5[%c0_9, %c0_10] : memref<64x256xf32, #tpu.memory_space<vmem>>, vector<64x256xf32>
    %cst_11 = arith.constant dense<0.000000e+00> : vector<8x256xf32>
    %14 = tpu.matmul %12, %13, %cst_11 {dimension_numbers = #tpu.dot_dimension_numbers<[1], [0], [0], [1], [0, 0, 1, 1], [], []>} : vector<8x64xf32>, vector<64x256xf32>, vector<8x256xf32> -> vector<8x256xf32>
    %15 = arith.addf %11, %14 : vector<8x256xf32>
    %c8_i32 = arith.constant 8 : i32
    %16 = arith.muli %c0_i32, %c8_i32 : i32
    %17 = tpu.assume_multiple %16, 8 : i32
    %18 = arith.index_cast %17 : i32 to index
    %c0_12 = arith.constant 0 : index
    %19 = vector.load %arg10[%18, %c0_12] : memref<64x256xf32, #tpu.memory_space<vmem>>, vector<8x256xf32>
    %c0_13 = arith.constant 0 : index
    %c0_14 = arith.constant 0 : index
    %20 = vector.load %arg2[%c0_13, %c0_14] : memref<64x256xf32, #tpu.memory_space<vmem>>, vector<64x256xf32>
    %cst_15 = arith.constant dense<0.000000e+00> : vector<8x256xf32>
    %21 = tpu.matmul %12, %20, %cst_15 {dimension_numbers = #tpu.dot_dimension_numbers<[1], [0], [0], [1], [0, 0, 1, 1], [], []>} : vector<8x64xf32>, vector<64x256xf32>, vector<8x256xf32> -> vector<8x256xf32>
    %22 = arith.addf %19, %21 : vector<8x256xf32>
    %23 = vector.extract_strided_slice %22 {offsets = [0, 0], sizes = [8, 128], strides = [1, 1]} : vector<8x256xf32> to vector<8x128xf32>
    %cst_16 = arith.constant 5.000000e-01 : f32
    %24 = vector.broadcast %cst_16 : f32 to vector<8x128xf32>
    %25 = arith.mulf %24, %23 : vector<8x128xf32>
    %26 = math.tanh %25 : vector<8x128xf32>
    %cst_17 = arith.constant 5.000000e-01 : f32
    %27 = vector.broadcast %cst_17 : f32 to vector<8x128xf32>
    %28 = arith.mulf %27, %26 : vector<8x128xf32>
    %cst_18 = arith.constant 5.000000e-01 : f32
    %29 = vector.broadcast %cst_18 : f32 to vector<8x128xf32>
    %30 = arith.addf %28, %29 : vector<8x128xf32>
    %31 = vector.extract_strided_slice %30 {offsets = [0, 0], sizes = [8, 64], strides = [1, 1]} : vector<8x128xf32> to vector<8x64xf32>
    %32 = vector.extract_strided_slice %30 {offsets = [0, 64], sizes = [8, 64], strides = [1, 1]} : vector<8x128xf32> to vector<8x64xf32>
    %33 = vector.extract_strided_slice %22 {offsets = [0, 128], sizes = [8, 64], strides = [1, 1]} : vector<8x256xf32> to vector<8x64xf32>
    %34 = math.tanh %33 : vector<8x64xf32>
    %35 = vector.extract_strided_slice %22 {offsets = [0, 192], sizes = [8, 64], strides = [1, 1]} : vector<8x256xf32> to vector<8x64xf32>
    %cst_19 = arith.constant 5.000000e-01 : f32
    %36 = vector.broadcast %cst_19 : f32 to vector<8x64xf32>
    %37 = arith.mulf %36, %35 : vector<8x64xf32>
    %38 = math.tanh %37 : vector<8x64xf32>
    %cst_20 = arith.constant 5.000000e-01 : f32
    %39 = vector.broadcast %cst_20 : f32 to vector<8x64xf32>
    %40 = arith.mulf %39, %38 : vector<8x64xf32>
    %cst_21 = arith.constant 5.000000e-01 : f32
    %41 = vector.broadcast %cst_21 : f32 to vector<8x64xf32>
    %42 = arith.addf %40, %41 : vector<8x64xf32>
    %43 = arith.mulf %32, %12 : vector<8x64xf32>
    %44 = arith.mulf %31, %34 : vector<8x64xf32>
    %45 = arith.addf %43, %44 : vector<8x64xf32>
    %46 = math.tanh %45 : vector<8x64xf32>
    %47 = arith.mulf %42, %46 : vector<8x64xf32>
    %c0_22 = arith.constant 0 : index
    %c0_23 = arith.constant 0 : index
    %48 = vector.load %arg4[%c0_22, %c0_23] : memref<64x256xf32, #tpu.memory_space<vmem>>, vector<64x256xf32>
    %cst_24 = arith.constant dense<0.000000e+00> : vector<8x256xf32>
    %49 = tpu.matmul %47, %48, %cst_24 {dimension_numbers = #tpu.dot_dimension_numbers<[1], [0], [0], [1], [0, 0, 1, 1], [], []>} : vector<8x64xf32>, vector<64x256xf32>, vector<8x256xf32> -> vector<8x256xf32>
    %50 = arith.addf %15, %49 : vector<8x256xf32>
    %51 = vector.extract_strided_slice %50 {offsets = [0, 0], sizes = [8, 128], strides = [1, 1]} : vector<8x256xf32> to vector<8x128xf32>
    %cst_25 = arith.constant 5.000000e-01 : f32
    %52 = vector.broadcast %cst_25 : f32 to vector<8x128xf32>
    %53 = arith.mulf %52, %51 : vector<8x128xf32>
    %54 = math.tanh %53 : vector<8x128xf32>
    %cst_26 = arith.constant 5.000000e-01 : f32
    %55 = vector.broadcast %cst_26 : f32 to vector<8x128xf32>
    %56 = arith.mulf %55, %54 : vector<8x128xf32>
    %cst_27 = arith.constant 5.000000e-01 : f32
    %57 = vector.broadcast %cst_27 : f32 to vector<8x128xf32>
    %58 = arith.addf %56, %57 : vector<8x128xf32>
    %59 = vector.extract_strided_slice %58 {offsets = [0, 0], sizes = [8, 64], strides = [1, 1]} : vector<8x128xf32> to vector<8x64xf32>
    %60 = vector.extract_strided_slice %58 {offsets = [0, 64], sizes = [8, 64], strides = [1, 1]} : vector<8x128xf32> to vector<8x64xf32>
    %61 = vector.extract_strided_slice %50 {offsets = [0, 128], sizes = [8, 64], strides = [1, 1]} : vector<8x256xf32> to vector<8x64xf32>
    %62 = math.tanh %61 : vector<8x64xf32>
    %63 = vector.extract_strided_slice %50 {offsets = [0, 192], sizes = [8, 64], strides = [1, 1]} : vector<8x256xf32> to vector<8x64xf32>
    %cst_28 = arith.constant 5.000000e-01 : f32
    %64 = vector.broadcast %cst_28 : f32 to vector<8x64xf32>
    %65 = arith.mulf %64, %63 : vector<8x64xf32>
    %66 = math.tanh %65 : vector<8x64xf32>
    %cst_29 = arith.constant 5.000000e-01 : f32
    %67 = vector.broadcast %cst_29 : f32 to vector<8x64xf32>
    %68 = arith.mulf %67, %66 : vector<8x64xf32>
    %cst_30 = arith.constant 5.000000e-01 : f32
    %69 = vector.broadcast %cst_30 : f32 to vector<8x64xf32>
    %70 = arith.addf %68, %69 : vector<8x64xf32>
    %71 = arith.mulf %60, %12 : vector<8x64xf32>
    %72 = arith.mulf %59, %62 : vector<8x64xf32>
    %73 = arith.addf %71, %72 : vector<8x64xf32>
    %74 = math.tanh %73 : vector<8x64xf32>
    %75 = arith.mulf %70, %74 : vector<8x64xf32>
    %c1_i32 = arith.constant 1 : i32
    %c0_31 = arith.constant 0 : index
    %c0_32 = arith.constant 0 : index
    %76 = vector.load %arg5[%c0_31, %c0_32] : memref<64x256xf32, #tpu.memory_space<vmem>>, vector<64x256xf32>
    %cst_33 = arith.constant dense<0.000000e+00> : vector<8x256xf32>
    %77 = tpu.matmul %75, %76, %cst_33 {dimension_numbers = #tpu.dot_dimension_numbers<[1], [0], [0], [1], [0, 0, 1, 1], [], []>} : vector<8x64xf32>, vector<64x256xf32>, vector<8x256xf32> -> vector<8x256xf32>
    %78 = arith.addf %11, %77 : vector<8x256xf32>
    %c8_i32_34 = arith.constant 8 : i32
    %79 = arith.muli %c1_i32, %c8_i32_34 : i32
    %80 = tpu.assume_multiple %79, 8 : i32
    %81 = arith.index_cast %80 : i32 to index
    %c0_35 = arith.constant 0 : index
    %82 = vector.load %arg10[%81, %c0_35] : memref<64x256xf32, #tpu.memory_space<vmem>>, vector<8x256xf32>
    %c0_36 = arith.constant 0 : index
    %c0_37 = arith.constant 0 : index
    %83 = vector.load %arg2[%c0_36, %c0_37] : memref<64x256xf32, #tpu.memory_space<vmem>>, vector<64x256xf32>
    %cst_38 = arith.constant dense<0.000000e+00> : vector<8x256xf32>
    %84 = tpu.matmul %47, %83, %cst_38 {dimension_numbers = #tpu.dot_dimension_numbers<[1], [0], [0], [1], [0, 0, 1, 1], [], []>} : vector<8x64xf32>, vector<64x256xf32>, vector<8x256xf32> -> vector<8x256xf32>
    %85 = arith.addf %82, %84 : vector<8x256xf32>
    %86 = vector.extract_strided_slice %85 {offsets = [0, 0], sizes = [8, 128], strides = [1, 1]} : vector<8x256xf32> to vector<8x128xf32>
    %cst_39 = arith.constant 5.000000e-01 : f32
    %87 = vector.broadcast %cst_39 : f32 to vector<8x128xf32>
    %88 = arith.mulf %87, %86 : vector<8x128xf32>
    %89 = math.tanh %88 : vector<8x128xf32>
    %cst_40 = arith.constant 5.000000e-01 : f32
    %90 = vector.broadcast %cst_40 : f32 to vector<8x128xf32>
    %91 = arith.mulf %90, %89 : vector<8x128xf32>
    %cst_41 = arith.constant 5.000000e-01 : f32
    %92 = vector.broadcast %cst_41 : f32 to vector<8x128xf32>
    %93 = arith.addf %91, %92 : vector<8x128xf32>
    %94 = vector.extract_strided_slice %93 {offsets = [0, 0], sizes = [8, 64], strides = [1, 1]} : vector<8x128xf32> to vector<8x64xf32>
    %95 = vector.extract_strided_slice %93 {offsets = [0, 64], sizes = [8, 64], strides = [1, 1]} : vector<8x128xf32> to vector<8x64xf32>
    %96 = vector.extract_strided_slice %85 {offsets = [0, 128], sizes = [8, 64], strides = [1, 1]} : vector<8x256xf32> to vector<8x64xf32>
    %97 = math.tanh %96 : vector<8x64xf32>
    %98 = vector.extract_strided_slice %85 {offsets = [0, 192], sizes = [8, 64], strides = [1, 1]} : vector<8x256xf32> to vector<8x64xf32>
    %cst_42 = arith.constant 5.000000e-01 : f32
    %99 = vector.broadcast %cst_42 : f32 to vector<8x64xf32>
    %100 = arith.mulf %99, %98 : vector<8x64xf32>
    %101 = math.tanh %100 : vector<8x64xf32>
    %cst_43 = arith.constant 5.000000e-01 : f32
    %102 = vector.broadcast %cst_43 : f32 to vector<8x64xf32>
    %103 = arith.mulf %102, %101 : vector<8x64xf32>
    %cst_44 = arith.constant 5.000000e-01 : f32
    %104 = vector.broadcast %cst_44 : f32 to vector<8x64xf32>
    %105 = arith.addf %103, %104 : vector<8x64xf32>
    %106 = arith.mulf %95, %45 : vector<8x64xf32>
    %107 = arith.mulf %94, %97 : vector<8x64xf32>
    %108 = arith.addf %106, %107 : vector<8x64xf32>
    %109 = math.tanh %108 : vector<8x64xf32>
    %110 = arith.mulf %105, %109 : vector<8x64xf32>
    %c0_45 = arith.constant 0 : index
    %c0_46 = arith.constant 0 : index
    %111 = vector.load %arg4[%c0_45, %c0_46] : memref<64x256xf32, #tpu.memory_space<vmem>>, vector<64x256xf32>
    %cst_47 = arith.constant dense<0.000000e+00> : vector<8x256xf32>
    %112 = tpu.matmul %110, %111, %cst_47 {dimension_numbers = #tpu.dot_dimension_numbers<[1], [0], [0], [1], [0, 0, 1, 1], [], []>} : vector<8x64xf32>, vector<64x256xf32>, vector<8x256xf32> -> vector<8x256xf32>
    %113 = arith.addf %78, %112 : vector<8x256xf32>
    %114 = vector.extract_strided_slice %113 {offsets = [0, 0], sizes = [8, 128], strides = [1, 1]} : vector<8x256xf32> to vector<8x128xf32>
    %cst_48 = arith.constant 5.000000e-01 : f32
    %115 = vector.broadcast %cst_48 : f32 to vector<8x128xf32>
    %116 = arith.mulf %115, %114 : vector<8x128xf32>
    %117 = math.tanh %116 : vector<8x128xf32>
    %cst_49 = arith.constant 5.000000e-01 : f32
    %118 = vector.broadcast %cst_49 : f32 to vector<8x128xf32>
    %119 = arith.mulf %118, %117 : vector<8x128xf32>
    %cst_50 = arith.constant 5.000000e-01 : f32
    %120 = vector.broadcast %cst_50 : f32 to vector<8x128xf32>
    %121 = arith.addf %119, %120 : vector<8x128xf32>
    %122 = vector.extract_strided_slice %121 {offsets = [0, 0], sizes = [8, 64], strides = [1, 1]} : vector<8x128xf32> to vector<8x64xf32>
    %123 = vector.extract_strided_slice %121 {offsets = [0, 64], sizes = [8, 64], strides = [1, 1]} : vector<8x128xf32> to vector<8x64xf32>
    %124 = vector.extract_strided_slice %113 {offsets = [0, 128], sizes = [8, 64], strides = [1, 1]} : vector<8x256xf32> to vector<8x64xf32>
    %125 = math.tanh %124 : vector<8x64xf32>
    %126 = vector.extract_strided_slice %113 {offsets = [0, 192], sizes = [8, 64], strides = [1, 1]} : vector<8x256xf32> to vector<8x64xf32>
    %cst_51 = arith.constant 5.000000e-01 : f32
    %127 = vector.broadcast %cst_51 : f32 to vector<8x64xf32>
    %128 = arith.mulf %127, %126 : vector<8x64xf32>
    %129 = math.tanh %128 : vector<8x64xf32>
    %cst_52 = arith.constant 5.000000e-01 : f32
    %130 = vector.broadcast %cst_52 : f32 to vector<8x64xf32>
    %131 = arith.mulf %130, %129 : vector<8x64xf32>
    %cst_53 = arith.constant 5.000000e-01 : f32
    %132 = vector.broadcast %cst_53 : f32 to vector<8x64xf32>
    %133 = arith.addf %131, %132 : vector<8x64xf32>
    %134 = arith.mulf %123, %73 : vector<8x64xf32>
    %135 = arith.mulf %122, %125 : vector<8x64xf32>
    %136 = arith.addf %134, %135 : vector<8x64xf32>
    %137 = math.tanh %136 : vector<8x64xf32>
    %138 = arith.mulf %133, %137 : vector<8x64xf32>
    %c2_i32 = arith.constant 2 : i32
    %c0_54 = arith.constant 0 : index
    %c0_55 = arith.constant 0 : index
    %139 = vector.load %arg5[%c0_54, %c0_55] : memref<64x256xf32, #tpu.memory_space<vmem>>, vector<64x256xf32>
    %cst_56 = arith.constant dense<0.000000e+00> : vector<8x256xf32>
    %140 = tpu.matmul %138, %139, %cst_56 {dimension_numbers = #tpu.dot_dimension_numbers<[1], [0], [0], [1], [0, 0, 1, 1], [], []>} : vector<8x64xf32>, vector<64x256xf32>, vector<8x256xf32> -> vector<8x256xf32>
    %141 = arith.addf %11, %140 : vector<8x256xf32>
    %c8_i32_57 = arith.constant 8 : i32
    %142 = arith.muli %c2_i32, %c8_i32_57 : i32
    %143 = tpu.assume_multiple %142, 8 : i32
    %144 = arith.index_cast %143 : i32 to index
    %c0_58 = arith.constant 0 : index
    %145 = vector.load %arg10[%144, %c0_58] : memref<64x256xf32, #tpu.memory_space<vmem>>, vector<8x256xf32>
    %c0_59 = arith.constant 0 : index
    %c0_60 = arith.constant 0 : index
    %146 = vector.load %arg2[%c0_59, %c0_60] : memref<64x256xf32, #tpu.memory_space<vmem>>, vector<64x256xf32>
    %cst_61 = arith.constant dense<0.000000e+00> : vector<8x256xf32>
    %147 = tpu.matmul %110, %146, %cst_61 {dimension_numbers = #tpu.dot_dimension_numbers<[1], [0], [0], [1], [0, 0, 1, 1], [], []>} : vector<8x64xf32>, vector<64x256xf32>, vector<8x256xf32> -> vector<8x256xf32>
    %148 = arith.addf %145, %147 : vector<8x256xf32>
    %149 = vector.extract_strided_slice %148 {offsets = [0, 0], sizes = [8, 128], strides = [1, 1]} : vector<8x256xf32> to vector<8x128xf32>
    %cst_62 = arith.constant 5.000000e-01 : f32
    %150 = vector.broadcast %cst_62 : f32 to vector<8x128xf32>
    %151 = arith.mulf %150, %149 : vector<8x128xf32>
    %152 = math.tanh %151 : vector<8x128xf32>
    %cst_63 = arith.constant 5.000000e-01 : f32
    %153 = vector.broadcast %cst_63 : f32 to vector<8x128xf32>
    %154 = arith.mulf %153, %152 : vector<8x128xf32>
    %cst_64 = arith.constant 5.000000e-01 : f32
    %155 = vector.broadcast %cst_64 : f32 to vector<8x128xf32>
    %156 = arith.addf %154, %155 : vector<8x128xf32>
    %157 = vector.extract_strided_slice %156 {offsets = [0, 0], sizes = [8, 64], strides = [1, 1]} : vector<8x128xf32> to vector<8x64xf32>
    %158 = vector.extract_strided_slice %156 {offsets = [0, 64], sizes = [8, 64], strides = [1, 1]} : vector<8x128xf32> to vector<8x64xf32>
    %159 = vector.extract_strided_slice %148 {offsets = [0, 128], sizes = [8, 64], strides = [1, 1]} : vector<8x256xf32> to vector<8x64xf32>
    %160 = math.tanh %159 : vector<8x64xf32>
    %161 = vector.extract_strided_slice %148 {offsets = [0, 192], sizes = [8, 64], strides = [1, 1]} : vector<8x256xf32> to vector<8x64xf32>
    %cst_65 = arith.constant 5.000000e-01 : f32
    %162 = vector.broadcast %cst_65 : f32 to vector<8x64xf32>
    %163 = arith.mulf %162, %161 : vector<8x64xf32>
    %164 = math.tanh %163 : vector<8x64xf32>
    %cst_66 = arith.constant 5.000000e-01 : f32
    %165 = vector.broadcast %cst_66 : f32 to vector<8x64xf32>
    %166 = arith.mulf %165, %164 : vector<8x64xf32>
    %cst_67 = arith.constant 5.000000e-01 : f32
    %167 = vector.broadcast %cst_67 : f32 to vector<8x64xf32>
    %168 = arith.addf %166, %167 : vector<8x64xf32>
    %169 = arith.mulf %158, %108 : vector<8x64xf32>
    %170 = arith.mulf %157, %160 : vector<8x64xf32>
    %171 = arith.addf %169, %170 : vector<8x64xf32>
    %172 = math.tanh %171 : vector<8x64xf32>
    %173 = arith.mulf %168, %172 : vector<8x64xf32>
    %c0_68 = arith.constant 0 : index
    %c0_69 = arith.constant 0 : index
    %174 = vector.load %arg4[%c0_68, %c0_69] : memref<64x256xf32, #tpu.memory_space<vmem>>, vector<64x256xf32>
    %cst_70 = arith.constant dense<0.000000e+00> : vector<8x256xf32>
    %175 = tpu.matmul %173, %174, %cst_70 {dimension_numbers = #tpu.dot_dimension_numbers<[1], [0], [0], [1], [0, 0, 1, 1], [], []>} : vector<8x64xf32>, vector<64x256xf32>, vector<8x256xf32> -> vector<8x256xf32>
    %176 = arith.addf %141, %175 : vector<8x256xf32>
    %177 = vector.extract_strided_slice %176 {offsets = [0, 0], sizes = [8, 128], strides = [1, 1]} : vector<8x256xf32> to vector<8x128xf32>
    %cst_71 = arith.constant 5.000000e-01 : f32
    %178 = vector.broadcast %cst_71 : f32 to vector<8x128xf32>
    %179 = arith.mulf %178, %177 : vector<8x128xf32>
    %180 = math.tanh %179 : vector<8x128xf32>
    %cst_72 = arith.constant 5.000000e-01 : f32
    %181 = vector.broadcast %cst_72 : f32 to vector<8x128xf32>
    %182 = arith.mulf %181, %180 : vector<8x128xf32>
    %cst_73 = arith.constant 5.000000e-01 : f32
    %183 = vector.broadcast %cst_73 : f32 to vector<8x128xf32>
    %184 = arith.addf %182, %183 : vector<8x128xf32>
    %185 = vector.extract_strided_slice %184 {offsets = [0, 0], sizes = [8, 64], strides = [1, 1]} : vector<8x128xf32> to vector<8x64xf32>
    %186 = vector.extract_strided_slice %184 {offsets = [0, 64], sizes = [8, 64], strides = [1, 1]} : vector<8x128xf32> to vector<8x64xf32>
    %187 = vector.extract_strided_slice %176 {offsets = [0, 128], sizes = [8, 64], strides = [1, 1]} : vector<8x256xf32> to vector<8x64xf32>
    %188 = math.tanh %187 : vector<8x64xf32>
    %189 = vector.extract_strided_slice %176 {offsets = [0, 192], sizes = [8, 64], strides = [1, 1]} : vector<8x256xf32> to vector<8x64xf32>
    %cst_74 = arith.constant 5.000000e-01 : f32
    %190 = vector.broadcast %cst_74 : f32 to vector<8x64xf32>
    %191 = arith.mulf %190, %189 : vector<8x64xf32>
    %192 = math.tanh %191 : vector<8x64xf32>
    %cst_75 = arith.constant 5.000000e-01 : f32
    %193 = vector.broadcast %cst_75 : f32 to vector<8x64xf32>
    %194 = arith.mulf %193, %192 : vector<8x64xf32>
    %cst_76 = arith.constant 5.000000e-01 : f32
    %195 = vector.broadcast %cst_76 : f32 to vector<8x64xf32>
    %196 = arith.addf %194, %195 : vector<8x64xf32>
    %197 = arith.mulf %186, %136 : vector<8x64xf32>
    %198 = arith.mulf %185, %188 : vector<8x64xf32>
    %199 = arith.addf %197, %198 : vector<8x64xf32>
    %200 = math.tanh %199 : vector<8x64xf32>
    %201 = arith.mulf %196, %200 : vector<8x64xf32>
    %c3_i32 = arith.constant 3 : i32
    %c0_77 = arith.constant 0 : index
    %c0_78 = arith.constant 0 : index
    %202 = vector.load %arg5[%c0_77, %c0_78] : memref<64x256xf32, #tpu.memory_space<vmem>>, vector<64x256xf32>
    %cst_79 = arith.constant dense<0.000000e+00> : vector<8x256xf32>
    %203 = tpu.matmul %201, %202, %cst_79 {dimension_numbers = #tpu.dot_dimension_numbers<[1], [0], [0], [1], [0, 0, 1, 1], [], []>} : vector<8x64xf32>, vector<64x256xf32>, vector<8x256xf32> -> vector<8x256xf32>
    %204 = arith.addf %11, %203 : vector<8x256xf32>
    %c8_i32_80 = arith.constant 8 : i32
    %205 = arith.muli %c3_i32, %c8_i32_80 : i32
    %206 = tpu.assume_multiple %205, 8 : i32
    %207 = arith.index_cast %206 : i32 to index
    %c0_81 = arith.constant 0 : index
    %208 = vector.load %arg10[%207, %c0_81] : memref<64x256xf32, #tpu.memory_space<vmem>>, vector<8x256xf32>
    %c0_82 = arith.constant 0 : index
    %c0_83 = arith.constant 0 : index
    %209 = vector.load %arg2[%c0_82, %c0_83] : memref<64x256xf32, #tpu.memory_space<vmem>>, vector<64x256xf32>
    %cst_84 = arith.constant dense<0.000000e+00> : vector<8x256xf32>
    %210 = tpu.matmul %173, %209, %cst_84 {dimension_numbers = #tpu.dot_dimension_numbers<[1], [0], [0], [1], [0, 0, 1, 1], [], []>} : vector<8x64xf32>, vector<64x256xf32>, vector<8x256xf32> -> vector<8x256xf32>
    %211 = arith.addf %208, %210 : vector<8x256xf32>
    %212 = vector.extract_strided_slice %211 {offsets = [0, 0], sizes = [8, 128], strides = [1, 1]} : vector<8x256xf32> to vector<8x128xf32>
    %cst_85 = arith.constant 5.000000e-01 : f32
    %213 = vector.broadcast %cst_85 : f32 to vector<8x128xf32>
    %214 = arith.mulf %213, %212 : vector<8x128xf32>
    %215 = math.tanh %214 : vector<8x128xf32>
    %cst_86 = arith.constant 5.000000e-01 : f32
    %216 = vector.broadcast %cst_86 : f32 to vector<8x128xf32>
    %217 = arith.mulf %216, %215 : vector<8x128xf32>
    %cst_87 = arith.constant 5.000000e-01 : f32
    %218 = vector.broadcast %cst_87 : f32 to vector<8x128xf32>
    %219 = arith.addf %217, %218 : vector<8x128xf32>
    %220 = vector.extract_strided_slice %219 {offsets = [0, 0], sizes = [8, 64], strides = [1, 1]} : vector<8x128xf32> to vector<8x64xf32>
    %221 = vector.extract_strided_slice %219 {offsets = [0, 64], sizes = [8, 64], strides = [1, 1]} : vector<8x128xf32> to vector<8x64xf32>
    %222 = vector.extract_strided_slice %211 {offsets = [0, 128], sizes = [8, 64], strides = [1, 1]} : vector<8x256xf32> to vector<8x64xf32>
    %223 = math.tanh %222 : vector<8x64xf32>
    %224 = vector.extract_strided_slice %211 {offsets = [0, 192], sizes = [8, 64], strides = [1, 1]} : vector<8x256xf32> to vector<8x64xf32>
    %cst_88 = arith.constant 5.000000e-01 : f32
    %225 = vector.broadcast %cst_88 : f32 to vector<8x64xf32>
    %226 = arith.mulf %225, %224 : vector<8x64xf32>
    %227 = math.tanh %226 : vector<8x64xf32>
    %cst_89 = arith.constant 5.000000e-01 : f32
    %228 = vector.broadcast %cst_89 : f32 to vector<8x64xf32>
    %229 = arith.mulf %228, %227 : vector<8x64xf32>
    %cst_90 = arith.constant 5.000000e-01 : f32
    %230 = vector.broadcast %cst_90 : f32 to vector<8x64xf32>
    %231 = arith.addf %229, %230 : vector<8x64xf32>
    %232 = arith.mulf %221, %171 : vector<8x64xf32>
    %233 = arith.mulf %220, %223 : vector<8x64xf32>
    %234 = arith.addf %232, %233 : vector<8x64xf32>
    %235 = math.tanh %234 : vector<8x64xf32>
    %236 = arith.mulf %231, %235 : vector<8x64xf32>
    %c0_91 = arith.constant 0 : index
    %c0_92 = arith.constant 0 : index
    %237 = vector.load %arg4[%c0_91, %c0_92] : memref<64x256xf32, #tpu.memory_space<vmem>>, vector<64x256xf32>
    %cst_93 = arith.constant dense<0.000000e+00> : vector<8x256xf32>
    %238 = tpu.matmul %236, %237, %cst_93 {dimension_numbers = #tpu.dot_dimension_numbers<[1], [0], [0], [1], [0, 0, 1, 1], [], []>} : vector<8x64xf32>, vector<64x256xf32>, vector<8x256xf32> -> vector<8x256xf32>
    %239 = arith.addf %204, %238 : vector<8x256xf32>
    %240 = vector.extract_strided_slice %239 {offsets = [0, 0], sizes = [8, 128], strides = [1, 1]} : vector<8x256xf32> to vector<8x128xf32>
    %cst_94 = arith.constant 5.000000e-01 : f32
    %241 = vector.broadcast %cst_94 : f32 to vector<8x128xf32>
    %242 = arith.mulf %241, %240 : vector<8x128xf32>
    %243 = math.tanh %242 : vector<8x128xf32>
    %cst_95 = arith.constant 5.000000e-01 : f32
    %244 = vector.broadcast %cst_95 : f32 to vector<8x128xf32>
    %245 = arith.mulf %244, %243 : vector<8x128xf32>
    %cst_96 = arith.constant 5.000000e-01 : f32
    %246 = vector.broadcast %cst_96 : f32 to vector<8x128xf32>
    %247 = arith.addf %245, %246 : vector<8x128xf32>
    %248 = vector.extract_strided_slice %247 {offsets = [0, 0], sizes = [8, 64], strides = [1, 1]} : vector<8x128xf32> to vector<8x64xf32>
    %249 = vector.extract_strided_slice %247 {offsets = [0, 64], sizes = [8, 64], strides = [1, 1]} : vector<8x128xf32> to vector<8x64xf32>
    %250 = vector.extract_strided_slice %239 {offsets = [0, 128], sizes = [8, 64], strides = [1, 1]} : vector<8x256xf32> to vector<8x64xf32>
    %251 = math.tanh %250 : vector<8x64xf32>
    %252 = vector.extract_strided_slice %239 {offsets = [0, 192], sizes = [8, 64], strides = [1, 1]} : vector<8x256xf32> to vector<8x64xf32>
    %cst_97 = arith.constant 5.000000e-01 : f32
    %253 = vector.broadcast %cst_97 : f32 to vector<8x64xf32>
    %254 = arith.mulf %253, %252 : vector<8x64xf32>
    %255 = math.tanh %254 : vector<8x64xf32>
    %cst_98 = arith.constant 5.000000e-01 : f32
    %256 = vector.broadcast %cst_98 : f32 to vector<8x64xf32>
    %257 = arith.mulf %256, %255 : vector<8x64xf32>
    %cst_99 = arith.constant 5.000000e-01 : f32
    %258 = vector.broadcast %cst_99 : f32 to vector<8x64xf32>
    %259 = arith.addf %257, %258 : vector<8x64xf32>
    %260 = arith.mulf %249, %199 : vector<8x64xf32>
    %261 = arith.mulf %248, %251 : vector<8x64xf32>
    %262 = arith.addf %260, %261 : vector<8x64xf32>
    %263 = math.tanh %262 : vector<8x64xf32>
    %264 = arith.mulf %259, %263 : vector<8x64xf32>
    %c4_i32 = arith.constant 4 : i32
    %c0_100 = arith.constant 0 : index
    %c0_101 = arith.constant 0 : index
    %265 = vector.load %arg5[%c0_100, %c0_101] : memref<64x256xf32, #tpu.memory_space<vmem>>, vector<64x256xf32>
    %cst_102 = arith.constant dense<0.000000e+00> : vector<8x256xf32>
    %266 = tpu.matmul %264, %265, %cst_102 {dimension_numbers = #tpu.dot_dimension_numbers<[1], [0], [0], [1], [0, 0, 1, 1], [], []>} : vector<8x64xf32>, vector<64x256xf32>, vector<8x256xf32> -> vector<8x256xf32>
    %267 = arith.addf %11, %266 : vector<8x256xf32>
    %c8_i32_103 = arith.constant 8 : i32
    %268 = arith.muli %c4_i32, %c8_i32_103 : i32
    %269 = tpu.assume_multiple %268, 8 : i32
    %270 = arith.index_cast %269 : i32 to index
    %c0_104 = arith.constant 0 : index
    %271 = vector.load %arg10[%270, %c0_104] : memref<64x256xf32, #tpu.memory_space<vmem>>, vector<8x256xf32>
    %c0_105 = arith.constant 0 : index
    %c0_106 = arith.constant 0 : index
    %272 = vector.load %arg2[%c0_105, %c0_106] : memref<64x256xf32, #tpu.memory_space<vmem>>, vector<64x256xf32>
    %cst_107 = arith.constant dense<0.000000e+00> : vector<8x256xf32>
    %273 = tpu.matmul %236, %272, %cst_107 {dimension_numbers = #tpu.dot_dimension_numbers<[1], [0], [0], [1], [0, 0, 1, 1], [], []>} : vector<8x64xf32>, vector<64x256xf32>, vector<8x256xf32> -> vector<8x256xf32>
    %274 = arith.addf %271, %273 : vector<8x256xf32>
    %275 = vector.extract_strided_slice %274 {offsets = [0, 0], sizes = [8, 128], strides = [1, 1]} : vector<8x256xf32> to vector<8x128xf32>
    %cst_108 = arith.constant 5.000000e-01 : f32
    %276 = vector.broadcast %cst_108 : f32 to vector<8x128xf32>
    %277 = arith.mulf %276, %275 : vector<8x128xf32>
    %278 = math.tanh %277 : vector<8x128xf32>
    %cst_109 = arith.constant 5.000000e-01 : f32
    %279 = vector.broadcast %cst_109 : f32 to vector<8x128xf32>
    %280 = arith.mulf %279, %278 : vector<8x128xf32>
    %cst_110 = arith.constant 5.000000e-01 : f32
    %281 = vector.broadcast %cst_110 : f32 to vector<8x128xf32>
    %282 = arith.addf %280, %281 : vector<8x128xf32>
    %283 = vector.extract_strided_slice %282 {offsets = [0, 0], sizes = [8, 64], strides = [1, 1]} : vector<8x128xf32> to vector<8x64xf32>
    %284 = vector.extract_strided_slice %282 {offsets = [0, 64], sizes = [8, 64], strides = [1, 1]} : vector<8x128xf32> to vector<8x64xf32>
    %285 = vector.extract_strided_slice %274 {offsets = [0, 128], sizes = [8, 64], strides = [1, 1]} : vector<8x256xf32> to vector<8x64xf32>
    %286 = math.tanh %285 : vector<8x64xf32>
    %287 = vector.extract_strided_slice %274 {offsets = [0, 192], sizes = [8, 64], strides = [1, 1]} : vector<8x256xf32> to vector<8x64xf32>
    %cst_111 = arith.constant 5.000000e-01 : f32
    %288 = vector.broadcast %cst_111 : f32 to vector<8x64xf32>
    %289 = arith.mulf %288, %287 : vector<8x64xf32>
    %290 = math.tanh %289 : vector<8x64xf32>
    %cst_112 = arith.constant 5.000000e-01 : f32
    %291 = vector.broadcast %cst_112 : f32 to vector<8x64xf32>
    %292 = arith.mulf %291, %290 : vector<8x64xf32>
    %cst_113 = arith.constant 5.000000e-01 : f32
    %293 = vector.broadcast %cst_113 : f32 to vector<8x64xf32>
    %294 = arith.addf %292, %293 : vector<8x64xf32>
    %295 = arith.mulf %284, %234 : vector<8x64xf32>
    %296 = arith.mulf %283, %286 : vector<8x64xf32>
    %297 = arith.addf %295, %296 : vector<8x64xf32>
    %298 = math.tanh %297 : vector<8x64xf32>
    %299 = arith.mulf %294, %298 : vector<8x64xf32>
    %c0_114 = arith.constant 0 : index
    %c0_115 = arith.constant 0 : index
    %300 = vector.load %arg4[%c0_114, %c0_115] : memref<64x256xf32, #tpu.memory_space<vmem>>, vector<64x256xf32>
    %cst_116 = arith.constant dense<0.000000e+00> : vector<8x256xf32>
    %301 = tpu.matmul %299, %300, %cst_116 {dimension_numbers = #tpu.dot_dimension_numbers<[1], [0], [0], [1], [0, 0, 1, 1], [], []>} : vector<8x64xf32>, vector<64x256xf32>, vector<8x256xf32> -> vector<8x256xf32>
    %302 = arith.addf %267, %301 : vector<8x256xf32>
    %303 = vector.extract_strided_slice %302 {offsets = [0, 0], sizes = [8, 128], strides = [1, 1]} : vector<8x256xf32> to vector<8x128xf32>
    %cst_117 = arith.constant 5.000000e-01 : f32
    %304 = vector.broadcast %cst_117 : f32 to vector<8x128xf32>
    %305 = arith.mulf %304, %303 : vector<8x128xf32>
    %306 = math.tanh %305 : vector<8x128xf32>
    %cst_118 = arith.constant 5.000000e-01 : f32
    %307 = vector.broadcast %cst_118 : f32 to vector<8x128xf32>
    %308 = arith.mulf %307, %306 : vector<8x128xf32>
    %cst_119 = arith.constant 5.000000e-01 : f32
    %309 = vector.broadcast %cst_119 : f32 to vector<8x128xf32>
    %310 = arith.addf %308, %309 : vector<8x128xf32>
    %311 = vector.extract_strided_slice %310 {offsets = [0, 0], sizes = [8, 64], strides = [1, 1]} : vector<8x128xf32> to vector<8x64xf32>
    %312 = vector.extract_strided_slice %310 {offsets = [0, 64], sizes = [8, 64], strides = [1, 1]} : vector<8x128xf32> to vector<8x64xf32>
    %313 = vector.extract_strided_slice %302 {offsets = [0, 128], sizes = [8, 64], strides = [1, 1]} : vector<8x256xf32> to vector<8x64xf32>
    %314 = math.tanh %313 : vector<8x64xf32>
    %315 = vector.extract_strided_slice %302 {offsets = [0, 192], sizes = [8, 64], strides = [1, 1]} : vector<8x256xf32> to vector<8x64xf32>
    %cst_120 = arith.constant 5.000000e-01 : f32
    %316 = vector.broadcast %cst_120 : f32 to vector<8x64xf32>
    %317 = arith.mulf %316, %315 : vector<8x64xf32>
    %318 = math.tanh %317 : vector<8x64xf32>
    %cst_121 = arith.constant 5.000000e-01 : f32
    %319 = vector.broadcast %cst_121 : f32 to vector<8x64xf32>
    %320 = arith.mulf %319, %318 : vector<8x64xf32>
    %cst_122 = arith.constant 5.000000e-01 : f32
    %321 = vector.broadcast %cst_122 : f32 to vector<8x64xf32>
    %322 = arith.addf %320, %321 : vector<8x64xf32>
    %323 = arith.mulf %312, %262 : vector<8x64xf32>
    %324 = arith.mulf %311, %314 : vector<8x64xf32>
    %325 = arith.addf %323, %324 : vector<8x64xf32>
    %326 = math.tanh %325 : vector<8x64xf32>
    %327 = arith.mulf %322, %326 : vector<8x64xf32>
    %c5_i32 = arith.constant 5 : i32
    %c0_123 = arith.constant 0 : index
    %c0_124 = arith.constant 0 : index
    %328 = vector.load %arg5[%c0_123, %c0_124] : memref<64x256xf32, #tpu.memory_space<vmem>>, vector<64x256xf32>
    %cst_125 = arith.constant dense<0.000000e+00> : vector<8x256xf32>
    %329 = tpu.matmul %327, %328, %cst_125 {dimension_numbers = #tpu.dot_dimension_numbers<[1], [0], [0], [1], [0, 0, 1, 1], [], []>} : vector<8x64xf32>, vector<64x256xf32>, vector<8x256xf32> -> vector<8x256xf32>
    %330 = arith.addf %11, %329 : vector<8x256xf32>
    %c8_i32_126 = arith.constant 8 : i32
    %331 = arith.muli %c5_i32, %c8_i32_126 : i32
    %332 = tpu.assume_multiple %331, 8 : i32
    %333 = arith.index_cast %332 : i32 to index
    %c0_127 = arith.constant 0 : index
    %334 = vector.load %arg10[%333, %c0_127] : memref<64x256xf32, #tpu.memory_space<vmem>>, vector<8x256xf32>
    %c0_128 = arith.constant 0 : index
    %c0_129 = arith.constant 0 : index
    %335 = vector.load %arg2[%c0_128, %c0_129] : memref<64x256xf32, #tpu.memory_space<vmem>>, vector<64x256xf32>
    %cst_130 = arith.constant dense<0.000000e+00> : vector<8x256xf32>
    %336 = tpu.matmul %299, %335, %cst_130 {dimension_numbers = #tpu.dot_dimension_numbers<[1], [0], [0], [1], [0, 0, 1, 1], [], []>} : vector<8x64xf32>, vector<64x256xf32>, vector<8x256xf32> -> vector<8x256xf32>
    %337 = arith.addf %334, %336 : vector<8x256xf32>
    %338 = vector.extract_strided_slice %337 {offsets = [0, 0], sizes = [8, 128], strides = [1, 1]} : vector<8x256xf32> to vector<8x128xf32>
    %cst_131 = arith.constant 5.000000e-01 : f32
    %339 = vector.broadcast %cst_131 : f32 to vector<8x128xf32>
    %340 = arith.mulf %339, %338 : vector<8x128xf32>
    %341 = math.tanh %340 : vector<8x128xf32>
    %cst_132 = arith.constant 5.000000e-01 : f32
    %342 = vector.broadcast %cst_132 : f32 to vector<8x128xf32>
    %343 = arith.mulf %342, %341 : vector<8x128xf32>
    %cst_133 = arith.constant 5.000000e-01 : f32
    %344 = vector.broadcast %cst_133 : f32 to vector<8x128xf32>
    %345 = arith.addf %343, %344 : vector<8x128xf32>
    %346 = vector.extract_strided_slice %345 {offsets = [0, 0], sizes = [8, 64], strides = [1, 1]} : vector<8x128xf32> to vector<8x64xf32>
    %347 = vector.extract_strided_slice %345 {offsets = [0, 64], sizes = [8, 64], strides = [1, 1]} : vector<8x128xf32> to vector<8x64xf32>
    %348 = vector.extract_strided_slice %337 {offsets = [0, 128], sizes = [8, 64], strides = [1, 1]} : vector<8x256xf32> to vector<8x64xf32>
    %349 = math.tanh %348 : vector<8x64xf32>
    %350 = vector.extract_strided_slice %337 {offsets = [0, 192], sizes = [8, 64], strides = [1, 1]} : vector<8x256xf32> to vector<8x64xf32>
    %cst_134 = arith.constant 5.000000e-01 : f32
    %351 = vector.broadcast %cst_134 : f32 to vector<8x64xf32>
    %352 = arith.mulf %351, %350 : vector<8x64xf32>
    %353 = math.tanh %352 : vector<8x64xf32>
    %cst_135 = arith.constant 5.000000e-01 : f32
    %354 = vector.broadcast %cst_135 : f32 to vector<8x64xf32>
    %355 = arith.mulf %354, %353 : vector<8x64xf32>
    %cst_136 = arith.constant 5.000000e-01 : f32
    %356 = vector.broadcast %cst_136 : f32 to vector<8x64xf32>
    %357 = arith.addf %355, %356 : vector<8x64xf32>
    %358 = arith.mulf %347, %297 : vector<8x64xf32>
    %359 = arith.mulf %346, %349 : vector<8x64xf32>
    %360 = arith.addf %358, %359 : vector<8x64xf32>
    %361 = math.tanh %360 : vector<8x64xf32>
    %362 = arith.mulf %357, %361 : vector<8x64xf32>
    %c0_137 = arith.constant 0 : index
    %c0_138 = arith.constant 0 : index
    %363 = vector.load %arg4[%c0_137, %c0_138] : memref<64x256xf32, #tpu.memory_space<vmem>>, vector<64x256xf32>
    %cst_139 = arith.constant dense<0.000000e+00> : vector<8x256xf32>
    %364 = tpu.matmul %362, %363, %cst_139 {dimension_numbers = #tpu.dot_dimension_numbers<[1], [0], [0], [1], [0, 0, 1, 1], [], []>} : vector<8x64xf32>, vector<64x256xf32>, vector<8x256xf32> -> vector<8x256xf32>
    %365 = arith.addf %330, %364 : vector<8x256xf32>
    %366 = vector.extract_strided_slice %365 {offsets = [0, 0], sizes = [8, 128], strides = [1, 1]} : vector<8x256xf32> to vector<8x128xf32>
    %cst_140 = arith.constant 5.000000e-01 : f32
    %367 = vector.broadcast %cst_140 : f32 to vector<8x128xf32>
    %368 = arith.mulf %367, %366 : vector<8x128xf32>
    %369 = math.tanh %368 : vector<8x128xf32>
    %cst_141 = arith.constant 5.000000e-01 : f32
    %370 = vector.broadcast %cst_141 : f32 to vector<8x128xf32>
    %371 = arith.mulf %370, %369 : vector<8x128xf32>
    %cst_142 = arith.constant 5.000000e-01 : f32
    %372 = vector.broadcast %cst_142 : f32 to vector<8x128xf32>
    %373 = arith.addf %371, %372 : vector<8x128xf32>
    %374 = vector.extract_strided_slice %373 {offsets = [0, 0], sizes = [8, 64], strides = [1, 1]} : vector<8x128xf32> to vector<8x64xf32>
    %375 = vector.extract_strided_slice %373 {offsets = [0, 64], sizes = [8, 64], strides = [1, 1]} : vector<8x128xf32> to vector<8x64xf32>
    %376 = vector.extract_strided_slice %365 {offsets = [0, 128], sizes = [8, 64], strides = [1, 1]} : vector<8x256xf32> to vector<8x64xf32>
    %377 = math.tanh %376 : vector<8x64xf32>
    %378 = vector.extract_strided_slice %365 {offsets = [0, 192], sizes = [8, 64], strides = [1, 1]} : vector<8x256xf32> to vector<8x64xf32>
    %cst_143 = arith.constant 5.000000e-01 : f32
    %379 = vector.broadcast %cst_143 : f32 to vector<8x64xf32>
    %380 = arith.mulf %379, %378 : vector<8x64xf32>
    %381 = math.tanh %380 : vector<8x64xf32>
    %cst_144 = arith.constant 5.000000e-01 : f32
    %382 = vector.broadcast %cst_144 : f32 to vector<8x64xf32>
    %383 = arith.mulf %382, %381 : vector<8x64xf32>
    %cst_145 = arith.constant 5.000000e-01 : f32
    %384 = vector.broadcast %cst_145 : f32 to vector<8x64xf32>
    %385 = arith.addf %383, %384 : vector<8x64xf32>
    %386 = arith.mulf %375, %325 : vector<8x64xf32>
    %387 = arith.mulf %374, %377 : vector<8x64xf32>
    %388 = arith.addf %386, %387 : vector<8x64xf32>
    %389 = math.tanh %388 : vector<8x64xf32>
    %390 = arith.mulf %385, %389 : vector<8x64xf32>
    %c6_i32 = arith.constant 6 : i32
    %c0_146 = arith.constant 0 : index
    %c0_147 = arith.constant 0 : index
    %391 = vector.load %arg5[%c0_146, %c0_147] : memref<64x256xf32, #tpu.memory_space<vmem>>, vector<64x256xf32>
    %cst_148 = arith.constant dense<0.000000e+00> : vector<8x256xf32>
    %392 = tpu.matmul %390, %391, %cst_148 {dimension_numbers = #tpu.dot_dimension_numbers<[1], [0], [0], [1], [0, 0, 1, 1], [], []>} : vector<8x64xf32>, vector<64x256xf32>, vector<8x256xf32> -> vector<8x256xf32>
    %393 = arith.addf %11, %392 : vector<8x256xf32>
    %c8_i32_149 = arith.constant 8 : i32
    %394 = arith.muli %c6_i32, %c8_i32_149 : i32
    %395 = tpu.assume_multiple %394, 8 : i32
    %396 = arith.index_cast %395 : i32 to index
    %c0_150 = arith.constant 0 : index
    %397 = vector.load %arg10[%396, %c0_150] : memref<64x256xf32, #tpu.memory_space<vmem>>, vector<8x256xf32>
    %c0_151 = arith.constant 0 : index
    %c0_152 = arith.constant 0 : index
    %398 = vector.load %arg2[%c0_151, %c0_152] : memref<64x256xf32, #tpu.memory_space<vmem>>, vector<64x256xf32>
    %cst_153 = arith.constant dense<0.000000e+00> : vector<8x256xf32>
    %399 = tpu.matmul %362, %398, %cst_153 {dimension_numbers = #tpu.dot_dimension_numbers<[1], [0], [0], [1], [0, 0, 1, 1], [], []>} : vector<8x64xf32>, vector<64x256xf32>, vector<8x256xf32> -> vector<8x256xf32>
    %400 = arith.addf %397, %399 : vector<8x256xf32>
    %401 = vector.extract_strided_slice %400 {offsets = [0, 0], sizes = [8, 128], strides = [1, 1]} : vector<8x256xf32> to vector<8x128xf32>
    %cst_154 = arith.constant 5.000000e-01 : f32
    %402 = vector.broadcast %cst_154 : f32 to vector<8x128xf32>
    %403 = arith.mulf %402, %401 : vector<8x128xf32>
    %404 = math.tanh %403 : vector<8x128xf32>
    %cst_155 = arith.constant 5.000000e-01 : f32
    %405 = vector.broadcast %cst_155 : f32 to vector<8x128xf32>
    %406 = arith.mulf %405, %404 : vector<8x128xf32>
    %cst_156 = arith.constant 5.000000e-01 : f32
    %407 = vector.broadcast %cst_156 : f32 to vector<8x128xf32>
    %408 = arith.addf %406, %407 : vector<8x128xf32>
    %409 = vector.extract_strided_slice %408 {offsets = [0, 0], sizes = [8, 64], strides = [1, 1]} : vector<8x128xf32> to vector<8x64xf32>
    %410 = vector.extract_strided_slice %408 {offsets = [0, 64], sizes = [8, 64], strides = [1, 1]} : vector<8x128xf32> to vector<8x64xf32>
    %411 = vector.extract_strided_slice %400 {offsets = [0, 128], sizes = [8, 64], strides = [1, 1]} : vector<8x256xf32> to vector<8x64xf32>
    %412 = math.tanh %411 : vector<8x64xf32>
    %413 = vector.extract_strided_slice %400 {offsets = [0, 192], sizes = [8, 64], strides = [1, 1]} : vector<8x256xf32> to vector<8x64xf32>
    %cst_157 = arith.constant 5.000000e-01 : f32
    %414 = vector.broadcast %cst_157 : f32 to vector<8x64xf32>
    %415 = arith.mulf %414, %413 : vector<8x64xf32>
    %416 = math.tanh %415 : vector<8x64xf32>
    %cst_158 = arith.constant 5.000000e-01 : f32
    %417 = vector.broadcast %cst_158 : f32 to vector<8x64xf32>
    %418 = arith.mulf %417, %416 : vector<8x64xf32>
    %cst_159 = arith.constant 5.000000e-01 : f32
    %419 = vector.broadcast %cst_159 : f32 to vector<8x64xf32>
    %420 = arith.addf %418, %419 : vector<8x64xf32>
    %421 = arith.mulf %410, %360 : vector<8x64xf32>
    %422 = arith.mulf %409, %412 : vector<8x64xf32>
    %423 = arith.addf %421, %422 : vector<8x64xf32>
    %424 = math.tanh %423 : vector<8x64xf32>
    %425 = arith.mulf %420, %424 : vector<8x64xf32>
    %c0_160 = arith.constant 0 : index
    %c0_161 = arith.constant 0 : index
    %426 = vector.load %arg4[%c0_160, %c0_161] : memref<64x256xf32, #tpu.memory_space<vmem>>, vector<64x256xf32>
    %cst_162 = arith.constant dense<0.000000e+00> : vector<8x256xf32>
    %427 = tpu.matmul %425, %426, %cst_162 {dimension_numbers = #tpu.dot_dimension_numbers<[1], [0], [0], [1], [0, 0, 1, 1], [], []>} : vector<8x64xf32>, vector<64x256xf32>, vector<8x256xf32> -> vector<8x256xf32>
    %428 = arith.addf %393, %427 : vector<8x256xf32>
    %429 = vector.extract_strided_slice %428 {offsets = [0, 0], sizes = [8, 128], strides = [1, 1]} : vector<8x256xf32> to vector<8x128xf32>
    %cst_163 = arith.constant 5.000000e-01 : f32
    %430 = vector.broadcast %cst_163 : f32 to vector<8x128xf32>
    %431 = arith.mulf %430, %429 : vector<8x128xf32>
    %432 = math.tanh %431 : vector<8x128xf32>
    %cst_164 = arith.constant 5.000000e-01 : f32
    %433 = vector.broadcast %cst_164 : f32 to vector<8x128xf32>
    %434 = arith.mulf %433, %432 : vector<8x128xf32>
    %cst_165 = arith.constant 5.000000e-01 : f32
    %435 = vector.broadcast %cst_165 : f32 to vector<8x128xf32>
    %436 = arith.addf %434, %435 : vector<8x128xf32>
    %437 = vector.extract_strided_slice %436 {offsets = [0, 0], sizes = [8, 64], strides = [1, 1]} : vector<8x128xf32> to vector<8x64xf32>
    %438 = vector.extract_strided_slice %436 {offsets = [0, 64], sizes = [8, 64], strides = [1, 1]} : vector<8x128xf32> to vector<8x64xf32>
    %439 = vector.extract_strided_slice %428 {offsets = [0, 128], sizes = [8, 64], strides = [1, 1]} : vector<8x256xf32> to vector<8x64xf32>
    %440 = math.tanh %439 : vector<8x64xf32>
    %441 = vector.extract_strided_slice %428 {offsets = [0, 192], sizes = [8, 64], strides = [1, 1]} : vector<8x256xf32> to vector<8x64xf32>
    %cst_166 = arith.constant 5.000000e-01 : f32
    %442 = vector.broadcast %cst_166 : f32 to vector<8x64xf32>
    %443 = arith.mulf %442, %441 : vector<8x64xf32>
    %444 = math.tanh %443 : vector<8x64xf32>
    %cst_167 = arith.constant 5.000000e-01 : f32
    %445 = vector.broadcast %cst_167 : f32 to vector<8x64xf32>
    %446 = arith.mulf %445, %444 : vector<8x64xf32>
    %cst_168 = arith.constant 5.000000e-01 : f32
    %447 = vector.broadcast %cst_168 : f32 to vector<8x64xf32>
    %448 = arith.addf %446, %447 : vector<8x64xf32>
    %449 = arith.mulf %438, %388 : vector<8x64xf32>
    %450 = arith.mulf %437, %440 : vector<8x64xf32>
    %451 = arith.addf %449, %450 : vector<8x64xf32>
    %452 = math.tanh %451 : vector<8x64xf32>
    %453 = arith.mulf %448, %452 : vector<8x64xf32>
    %c7_i32 = arith.constant 7 : i32
    %c0_169 = arith.constant 0 : index
    %c0_170 = arith.constant 0 : index
    %454 = vector.load %arg5[%c0_169, %c0_170] : memref<64x256xf32, #tpu.memory_space<vmem>>, vector<64x256xf32>
    %cst_171 = arith.constant dense<0.000000e+00> : vector<8x256xf32>
    %455 = tpu.matmul %453, %454, %cst_171 {dimension_numbers = #tpu.dot_dimension_numbers<[1], [0], [0], [1], [0, 0, 1, 1], [], []>} : vector<8x64xf32>, vector<64x256xf32>, vector<8x256xf32> -> vector<8x256xf32>
    %456 = arith.addf %11, %455 : vector<8x256xf32>
    %c8_i32_172 = arith.constant 8 : i32
    %457 = arith.muli %c7_i32, %c8_i32_172 : i32
    %458 = tpu.assume_multiple %457, 8 : i32
    %459 = arith.index_cast %458 : i32 to index
    %c0_173 = arith.constant 0 : index
    %460 = vector.load %arg10[%459, %c0_173] : memref<64x256xf32, #tpu.memory_space<vmem>>, vector<8x256xf32>
    %c0_174 = arith.constant 0 : index
    %c0_175 = arith.constant 0 : index
    %461 = vector.load %arg2[%c0_174, %c0_175] : memref<64x256xf32, #tpu.memory_space<vmem>>, vector<64x256xf32>
    %cst_176 = arith.constant dense<0.000000e+00> : vector<8x256xf32>
    %462 = tpu.matmul %425, %461, %cst_176 {dimension_numbers = #tpu.dot_dimension_numbers<[1], [0], [0], [1], [0, 0, 1, 1], [], []>} : vector<8x64xf32>, vector<64x256xf32>, vector<8x256xf32> -> vector<8x256xf32>
    %463 = arith.addf %460, %462 : vector<8x256xf32>
    %464 = vector.extract_strided_slice %463 {offsets = [0, 0], sizes = [8, 128], strides = [1, 1]} : vector<8x256xf32> to vector<8x128xf32>
    %cst_177 = arith.constant 5.000000e-01 : f32
    %465 = vector.broadcast %cst_177 : f32 to vector<8x128xf32>
    %466 = arith.mulf %465, %464 : vector<8x128xf32>
    %467 = math.tanh %466 : vector<8x128xf32>
    %cst_178 = arith.constant 5.000000e-01 : f32
    %468 = vector.broadcast %cst_178 : f32 to vector<8x128xf32>
    %469 = arith.mulf %468, %467 : vector<8x128xf32>
    %cst_179 = arith.constant 5.000000e-01 : f32
    %470 = vector.broadcast %cst_179 : f32 to vector<8x128xf32>
    %471 = arith.addf %469, %470 : vector<8x128xf32>
    %472 = vector.extract_strided_slice %471 {offsets = [0, 0], sizes = [8, 64], strides = [1, 1]} : vector<8x128xf32> to vector<8x64xf32>
    %473 = vector.extract_strided_slice %471 {offsets = [0, 64], sizes = [8, 64], strides = [1, 1]} : vector<8x128xf32> to vector<8x64xf32>
    %474 = vector.extract_strided_slice %463 {offsets = [0, 128], sizes = [8, 64], strides = [1, 1]} : vector<8x256xf32> to vector<8x64xf32>
    %475 = math.tanh %474 : vector<8x64xf32>
    %476 = vector.extract_strided_slice %463 {offsets = [0, 192], sizes = [8, 64], strides = [1, 1]} : vector<8x256xf32> to vector<8x64xf32>
    %cst_180 = arith.constant 5.000000e-01 : f32
    %477 = vector.broadcast %cst_180 : f32 to vector<8x64xf32>
    %478 = arith.mulf %477, %476 : vector<8x64xf32>
    %479 = math.tanh %478 : vector<8x64xf32>
    %cst_181 = arith.constant 5.000000e-01 : f32
    %480 = vector.broadcast %cst_181 : f32 to vector<8x64xf32>
    %481 = arith.mulf %480, %479 : vector<8x64xf32>
    %cst_182 = arith.constant 5.000000e-01 : f32
    %482 = vector.broadcast %cst_182 : f32 to vector<8x64xf32>
    %483 = arith.addf %481, %482 : vector<8x64xf32>
    %484 = arith.mulf %473, %423 : vector<8x64xf32>
    %485 = arith.mulf %472, %475 : vector<8x64xf32>
    %486 = arith.addf %484, %485 : vector<8x64xf32>
    %487 = math.tanh %486 : vector<8x64xf32>
    %488 = arith.mulf %483, %487 : vector<8x64xf32>
    %c0_183 = arith.constant 0 : index
    %c0_184 = arith.constant 0 : index
    %489 = vector.load %arg4[%c0_183, %c0_184] : memref<64x256xf32, #tpu.memory_space<vmem>>, vector<64x256xf32>
    %cst_185 = arith.constant dense<0.000000e+00> : vector<8x256xf32>
    %490 = tpu.matmul %488, %489, %cst_185 {dimension_numbers = #tpu.dot_dimension_numbers<[1], [0], [0], [1], [0, 0, 1, 1], [], []>} : vector<8x64xf32>, vector<64x256xf32>, vector<8x256xf32> -> vector<8x256xf32>
    %491 = arith.addf %456, %490 : vector<8x256xf32>
    %492 = vector.extract_strided_slice %491 {offsets = [0, 0], sizes = [8, 128], strides = [1, 1]} : vector<8x256xf32> to vector<8x128xf32>
    %cst_186 = arith.constant 5.000000e-01 : f32
    %493 = vector.broadcast %cst_186 : f32 to vector<8x128xf32>
    %494 = arith.mulf %493, %492 : vector<8x128xf32>
    %495 = math.tanh %494 : vector<8x128xf32>
    %cst_187 = arith.constant 5.000000e-01 : f32
    %496 = vector.broadcast %cst_187 : f32 to vector<8x128xf32>
    %497 = arith.mulf %496, %495 : vector<8x128xf32>
    %cst_188 = arith.constant 5.000000e-01 : f32
    %498 = vector.broadcast %cst_188 : f32 to vector<8x128xf32>
    %499 = arith.addf %497, %498 : vector<8x128xf32>
    %500 = vector.extract_strided_slice %499 {offsets = [0, 0], sizes = [8, 64], strides = [1, 1]} : vector<8x128xf32> to vector<8x64xf32>
    %501 = vector.extract_strided_slice %499 {offsets = [0, 64], sizes = [8, 64], strides = [1, 1]} : vector<8x128xf32> to vector<8x64xf32>
    %502 = vector.extract_strided_slice %491 {offsets = [0, 128], sizes = [8, 64], strides = [1, 1]} : vector<8x256xf32> to vector<8x64xf32>
    %503 = math.tanh %502 : vector<8x64xf32>
    %504 = vector.extract_strided_slice %491 {offsets = [0, 192], sizes = [8, 64], strides = [1, 1]} : vector<8x256xf32> to vector<8x64xf32>
    %cst_189 = arith.constant 5.000000e-01 : f32
    %505 = vector.broadcast %cst_189 : f32 to vector<8x64xf32>
    %506 = arith.mulf %505, %504 : vector<8x64xf32>
    %507 = math.tanh %506 : vector<8x64xf32>
    %cst_190 = arith.constant 5.000000e-01 : f32
    %508 = vector.broadcast %cst_190 : f32 to vector<8x64xf32>
    %509 = arith.mulf %508, %507 : vector<8x64xf32>
    %cst_191 = arith.constant 5.000000e-01 : f32
    %510 = vector.broadcast %cst_191 : f32 to vector<8x64xf32>
    %511 = arith.addf %509, %510 : vector<8x64xf32>
    %512 = arith.mulf %501, %451 : vector<8x64xf32>
    %513 = arith.mulf %500, %503 : vector<8x64xf32>
    %514 = arith.addf %512, %513 : vector<8x64xf32>
    %515 = math.tanh %514 : vector<8x64xf32>
    %516 = arith.mulf %511, %515 : vector<8x64xf32>
    %c8_i32_192 = arith.constant 8 : i32
    %c0_193 = arith.constant 0 : index
    %c0_194 = arith.constant 0 : index
    %517 = vector.load %arg7[%c0_193, %c0_194] : memref<64x128xf32, #tpu.memory_space<vmem>>, vector<64x128xf32>
    %cst_195 = arith.constant dense<0.000000e+00> : vector<8x128xf32>
    %518 = tpu.matmul %516, %517, %cst_195 {dimension_numbers = #tpu.dot_dimension_numbers<[1], [0], [0], [1], [0, 0, 1, 1], [], []>} : vector<8x64xf32>, vector<64x128xf32>, vector<8x128xf32> -> vector<8x128xf32>
    %c0_196 = arith.constant 0 : index
    %c0_197 = arith.constant 0 : index
    %519 = vector.load %arg8[%c0_196, %c0_197] : memref<1x128xf32, #tpu.memory_space<vmem>>, vector<1x128xf32>
    %520 = vector.broadcast %519 : vector<1x128xf32> to vector<8x128xf32>
    %521 = arith.addf %518, %520 : vector<8x128xf32>
    %c0_198 = arith.constant 0 : index
    %c0_199 = arith.constant 0 : index
    %522 = vector.load %arg9[%c0_198, %c0_199] : memref<8x128xf32, #tpu.memory_space<vmem>>, vector<8x128xf32>
    tpu.vector_store %arg9[%c0_198, %c0_199], %521 {strides = array<i32>} : memref<8x128xf32, #tpu.memory_space<vmem>>, vector<8x128xf32>,
    return
  }
}

</mosaic_0001>

<llo_original>
// kernel: tpu_custom_call.1
$region0: #{tpu_custom_call.1}
  #allocation0 [shape = 'u32[]', space=smem, size = 0x4, offset = 0x4, fixed_abs, tag = 'smem constant byte address 0x4 - core index']
  #allocation1 [shape = 'u32[72,128]{1,0:T(1,128)}', space=vmem, size = 0x9000, scoped, tag = 'internal scratch']
  #allocation2 [shape = 'f32[64,256]{1,0:T(8,128)}', space=vmem, size = 0x10000, scoped, tag = 'scratch operand']
  %s0 = inlined_call_operand.vmem [shape: f32[64,1], index: 0, kind: input, shape index: {}]
  %s1 = inlined_call_operand.vmem [shape: f32[1,256], index: 1, kind: input, shape index: {}]
  %s2 = inlined_call_operand.hbm [shape: f32[64,256], index: 2, kind: input, shape index: {}]
  %s3 = inlined_call_operand.vmem [shape: f32[1,256], index: 3, kind: input, shape index: {}]
  %s4 = inlined_call_operand.hbm [shape: f32[64,256], index: 4, kind: input, shape index: {}]
  %s5 = inlined_call_operand.hbm [shape: f32[64,256], index: 5, kind: input, shape index: {}]
  %s6 = inlined_call_operand.vmem [shape: f32[1,256], index: 6, kind: input, shape index: {}]
  %s7 = inlined_call_operand.vmem [shape: f32[64,128], index: 7, kind: input, shape index: {}]
  %s8 = inlined_call_operand.vmem [shape: f32[1,128], index: 8, kind: input, shape index: {}]
  %s9 = inlined_call_operand.hbm [shape: f32[8,128], index: 9, kind: output, shape index: {}]
  %s10 = sld [smem:[#allocation0]]
  $region58: #{tpu_custom_call.1} parent=0
    _
  %s12 = ssub.s32 1, %s10
  %s13 = scalar_select 0, %s12, %s10
  $region1: #{tpu_custom_call.1} parent=0
    #allocation3 [shape = 'u8[65536]{0}', space=vmem, size = 0x10000, scoped, tag = 'input window, operand 2, single buffered']
    #allocation4 [shape = 's32[1]{0}', space=sflag, size = 0x4, scoped, tag = 'scoped memory for tpu_custom_call.1']
    #allocation5 [shape = 's32[1]{0}', space=sflag, size = 0x4, scoped, tag = 'scoped memory for tpu_custom_call.1']
    #allocation6 [shape = 'u8[65536]{0}', space=vmem, size = 0x10000, scoped, tag = 'input window, operand 4, single buffered']
    #allocation7 [shape = 's32[1]{0}', space=sflag, size = 0x4, scoped, tag = 'scoped memory for tpu_custom_call.1']
    #allocation8 [shape = 'u8[65536]{0}', space=vmem, size = 0x10000, scoped, tag = 'input window, operand 5, single buffered']
    #allocation9 [shape = 'u8[4096]{0}', space=vmem, size = 0x1000, scoped, tag = 'output window, operand 0, single buffered']
    %14 = vsyncpa [#allocation4], 0
    %15 = vsyncpa [#allocation7], 0
    %16 = vsyncpa [#allocation5], 0
    // Predicated region
    $region2: #{tpu_custom_call.1} parent=1 // pred_check
      _
    $region3: #{tpu_custom_call.1} parent=1 // pred_check_branch
      %18 = sbr.rel (0) target = $region5
    $region4: #{tpu_custom_call.1} parent=1 // pred_region
      _
    $region5: #{tpu_custom_call.1} parent=1 // pred_fallthru
      _
    // Predicated region
    $region6: #{tpu_custom_call.1} parent=1 // pred_check
      _
    $region7: #{tpu_custom_call.1} parent=1 // pred_check_branch
      %20 = sbr.rel (0) target = $region9
    $region8: #{tpu_custom_call.1} parent=1 // pred_region
      _
    $region9: #{tpu_custom_call.1} parent=1 // pred_fallthru
      _
    // Predicated region
    $region10: #{tpu_custom_call.1} parent=1 // pred_check
      _
    $region11: #{tpu_custom_call.1} parent=1 // pred_check_branch
      %22 = sbr.rel (0) target = $region13
    $region12: #{tpu_custom_call.1} parent=1 // pred_region
      %24 = vsyncadd [#allocation4], 0
      %s25 = sshll.u32 %s2, 4
      %s26 = int_to_ptr.hbm [resolvable:$true] %s25
      %s27 = sshll.u32 [#allocation3], 4
      %s28 = int_to_ptr.vmem [resolvable:$true] %s27
      %33 = dma.hbm_to_vmem [thread:$0]  %s26, 2048, %s28, [#allocation4], 256, 256, 16
    $region13: #{tpu_custom_call.1} parent=1 // pred_fallthru
      _
    // Predicated region
    $region14: #{tpu_custom_call.1} parent=1 // pred_check
      _
    $region15: #{tpu_custom_call.1} parent=1 // pred_check_branch
      %35 = sbr.rel (0) target = $region17
    $region16: #{tpu_custom_call.1} parent=1 // pred_region
      _
    $region17: #{tpu_custom_call.1} parent=1 // pred_fallthru
      _
    // Predicated region
    $region18: #{tpu_custom_call.1} parent=1 // pred_check
      _
    $region19: #{tpu_custom_call.1} parent=1 // pred_check_branch
      %37 = sbr.rel (0) target = $region21
    $region20: #{tpu_custom_call.1} parent=1 // pred_region
      %39 = vsyncadd [#allocation7], 0
      %s40 = sshll.u32 %s4, 4
      %s41 = int_to_ptr.hbm [resolvable:$true] %s40
      %s42 = sshll.u32 [#allocation6], 4
      %s43 = int_to_ptr.vmem [resolvable:$true] %s42
      %48 = dma.hbm_to_vmem [thread:$0]  %s41, 2048, %s43, [#allocation7], 256, 256, 16
    $region21: #{tpu_custom_call.1} parent=1 // pred_fallthru
      _
    // Predicated region
    $region22: #{tpu_custom_call.1} parent=1 // pred_check
      _
    $region23: #{tpu_custom_call.1} parent=1 // pred_check_branch
      %50 = sbr.rel (0) target = $region25
    $region24: #{tpu_custom_call.1} parent=1 // pred_region
      %52 = vsyncadd [#allocation7], 0
      %s53 = sshll.u32 %s5, 4
      %s54 = int_to_ptr.hbm [resolvable:$true] %s53
      %s55 = sshll.u32 [#allocation8], 4
      %s56 = int_to_ptr.vmem [resolvable:$true] %s55
      %61 = dma.hbm_to_vmem [thread:$0]  %s54, 2048, %s56, [#allocation7], 256, 256, 16
    $region25: #{tpu_custom_call.1} parent=1 // pred_fallthru
      _
    // Predicated region
    $region26: #{tpu_custom_call.1} parent=1 // pred_check
      _
    $region27: #{tpu_custom_call.1} parent=1 // pred_check_branch
      %63 = sbr.rel (0) target = $region29
    $region28: #{tpu_custom_call.1} parent=1 // pred_region
      _
    $region29: #{tpu_custom_call.1} parent=1 // pred_fallthru
      _
    // Predicated region
    $region30: #{tpu_custom_call.1} parent=1 // pred_check
      _
    $region31: #{tpu_custom_call.1} parent=1 // pred_check_branch
      %65 = sbr.rel (0) target = $region33
    $region32: #{tpu_custom_call.1} parent=1 // pred_region
      _
    $region33: #{tpu_custom_call.1} parent=1 // pred_fallthru
      _
    // Predicated region
    $region34: #{tpu_custom_call.1} parent=1 // pred_check
      _
    $region35: #{tpu_custom_call.1} parent=1 // pred_check_branch
      %67 = sbr.rel (0) target = $region37
    $region36: #{tpu_custom_call.1} parent=1 // pred_region
      _
    $region37: #{tpu_custom_call.1} parent=1 // pred_fallthru
      _
    // Predicated region
    $region38: #{tpu_custom_call.1} parent=1 // pred_check
      _
    $region39: #{tpu_custom_call.1} parent=1 // pred_check_branch
      %69 = sbr.rel (0) target = $region41
    $region40: #{tpu_custom_call.1} parent=1 // pred_region
      %71 = dma.done [#allocation4], 2048
    $region41: #{tpu_custom_call.1} parent=1 // pred_fallthru
      _
    // Predicated region
    $region42: #{tpu_custom_call.1} parent=1 // pred_check
      _
    $region43: #{tpu_custom_call.1} parent=1 // pred_check_branch
      %73 = sbr.rel (0) target = $region45
    $region44: #{tpu_custom_call.1} parent=1 // pred_region
      %75 = dma.done [#allocation7], 2048
    $region45: #{tpu_custom_call.1} parent=1 // pred_fallthru
      _
    // Predicated region
    $region46: #{tpu_custom_call.1} parent=1 // pred_check
      _
    $region47: #{tpu_custom_call.1} parent=1 // pred_check_branch
      %77 = sbr.rel (0) target = $region49
    $region48: #{tpu_custom_call.1} parent=1 // pred_region
      %79 = dma.done [#allocation7], 2048
    $region49: #{tpu_custom_call.1} parent=1 // pred_fallthru
      _
    %v80 = vld [vmem:[%s0] sm:$0xff]
    %v81 = vld [vmem:[%s0 + $0x8] sm:$0xff]
    %v82 = vld [vmem:[%s0 + $0x10] sm:$0xff]
    %v83 = vld [vmem:[%s0 + $0x18] sm:$0xff]
    %v84 = vld [vmem:[%s0 + $0x20] sm:$0xff]
    %v85 = vld [vmem:[%s0 + $0x28] sm:$0xff]
    %v86 = vld [vmem:[%s0 + $0x30] sm:$0xff]
    %v87 = vld [vmem:[%s0 + $0x38] sm:$0xff]
    %v88 = vld [vmem:[%s1] sm:$0x3]
    %90 = vset.pattern.permute.xlu0 0
    %91 = vperm.xlu0 %90, %v80
    %v92 = vpop.permute.xlu0 %91
    %95 = vset.pattern.permute.xlu0 0
    %96 = vperm.xlu0 %95, %v81
    %v97 = vpop.permute.xlu0 %96
    %100 = vset.pattern.permute.xlu0 0
    %101 = vperm.xlu0 %100, %v82
    %v102 = vpop.permute.xlu0 %101
    %105 = vset.pattern.permute.xlu0 0
    %106 = vperm.xlu0 %105, %v83
    %v107 = vpop.permute.xlu0 %106
    %110 = vset.pattern.permute.xlu0 0
    %111 = vperm.xlu0 %110, %v84
    %v112 = vpop.permute.xlu0 %111
    %115 = vset.pattern.permute.xlu0 0
    %116 = vperm.xlu0 %115, %v85
    %v117 = vpop.permute.xlu0 %116
    %120 = vset.pattern.permute.xlu0 0
    %121 = vperm.xlu0 %120, %v86
    %v122 = vpop.permute.xlu0 %121
    %125 = vset.pattern.permute.xlu0 0
    %126 = vperm.xlu0 %125, %v87
    %v127 = vpop.permute.xlu0 %126
    %v130 = vperm.slane %v88, 0
    %v131 = vperm.slane %v88, 1
    %v134 = vmul.f32 %v92, %v130
    %v135 = vmul.f32 %v92, %v131
    %v136 = vmul.f32 %v97, %v130
    %v137 = vmul.f32 %v97, %v131
    %v138 = vmul.f32 %v102, %v130
    %v139 = vmul.f32 %v102, %v131
    %v140 = vmul.f32 %v107, %v130
    %v141 = vmul.f32 %v107, %v131
    %v142 = vmul.f32 %v112, %v130
    %v143 = vmul.f32 %v112, %v131
    %v144 = vmul.f32 %v117, %v130
    %v145 = vmul.f32 %v117, %v131
    %v146 = vmul.f32 %v122, %v130
    %v147 = vmul.f32 %v122, %v131
    %v148 = vmul.f32 %v127, %v130
    %v149 = vmul.f32 %v127, %v131
    %v150 = vld [vmem:[%s3] sm:$0x3]
    %v152 = vperm.slane %v150, 0
    %v153 = vperm.slane %v150, 1
    %v156 = vadd.f32 %v134, %v152
    %v157 = vadd.f32 %v135, %v153
    %v158 = vadd.f32 %v136, %v152
    %v159 = vadd.f32 %v137, %v153
    %v160 = vadd.f32 %v138, %v152
    %v161 = vadd.f32 %v139, %v153
    %v162 = vadd.f32 %v140, %v152
    %v163 = vadd.f32 %v141, %v153
    %v164 = vadd.f32 %v142, %v152
    %v165 = vadd.f32 %v143, %v153
    %v166 = vadd.f32 %v144, %v152
    %v167 = vadd.f32 %v145, %v153
    %v168 = vadd.f32 %v146, %v152
    %v169 = vadd.f32 %v147, %v153
    %v170 = vadd.f32 %v148, %v152
    %v171 = vadd.f32 %v149, %v153
    %172 = vst [vmem:[#allocation2] sm:$0xff] %v156
    %173 = vst [vmem:[#allocation2 + $0x8] sm:$0xff] %v157
    %174 = vst [vmem:[#allocation2 + $0x10] sm:$0xff] %v158
    %175 = vst [vmem:[#allocation2 + $0x18] sm:$0xff] %v159
    %176 = vst [vmem:[#allocation2 + $0x20] sm:$0xff] %v160
    %177 = vst [vmem:[#allocation2 + $0x28] sm:$0xff] %v161
    %178 = vst [vmem:[#allocation2 + $0x30] sm:$0xff] %v162
    %179 = vst [vmem:[#allocation2 + $0x38] sm:$0xff] %v163
    %180 = vst [vmem:[#allocation2 + $0x40] sm:$0xff] %v164
    %181 = vst [vmem:[#allocation2 + $0x48] sm:$0xff] %v165
    %182 = vst [vmem:[#allocation2 + $0x50] sm:$0xff] %v166
    %183 = vst [vmem:[#allocation2 + $0x58] sm:$0xff] %v167
    %184 = vst [vmem:[#allocation2 + $0x60] sm:$0xff] %v168
    %185 = vst [vmem:[#allocation2 + $0x68] sm:$0xff] %v169
    %186 = vst [vmem:[#allocation2 + $0x70] sm:$0xff] %v170
    %187 = vst [vmem:[#allocation2 + $0x78] sm:$0xff] %v171
    %v188 = vld [vmem:[%s6] sm:$0x3]
    %v190 = vperm.slane %v188, 0
    %v191 = vperm.slane %v188, 1
    %v194 = vld [vmem:[#allocation8] sm:$0xff]
    %v195 = vld [vmem:[#allocation8 + $0x8] sm:$0xff]
    %v196 = vld [vmem:[#allocation8 + $0x10] sm:$0xff]
    %v197 = vld [vmem:[#allocation8 + $0x18] sm:$0xff]
    %v198 = vld [vmem:[#allocation8 + $0x20] sm:$0xff]
    %v199 = vld [vmem:[#allocation8 + $0x28] sm:$0xff]
    %v200 = vld [vmem:[#allocation8 + $0x30] sm:$0xff]
    %v201 = vld [vmem:[#allocation8 + $0x38] sm:$0xff]
    %v202 = vld [vmem:[#allocation8 + $0x40] sm:$0xff]
    %v203 = vld [vmem:[#allocation8 + $0x48] sm:$0xff]
    %v204 = vld [vmem:[#allocation8 + $0x50] sm:$0xff]
    %v205 = vld [vmem:[#allocation8 + $0x58] sm:$0xff]
    %v206 = vld [vmem:[#allocation8 + $0x60] sm:$0xff]
    %v207 = vld [vmem:[#allocation8 + $0x68] sm:$0xff]
    %v208 = vld [vmem:[#allocation8 + $0x70] sm:$0xff]
    %v209 = vld [vmem:[#allocation8 + $0x78] sm:$0xff]
    %vm210 = vcmask 523264
    %v212 = vsel %vm210, 0.0, 0
    %214 = vmatpush.msra.mxu0 0.0
    %215 = vmatpush.msra.mxu0 0.0
    %216 = vmatpush.msra.mxu0 0.0
    %217 = vmatpush.msra.mxu0 0.0
    %218 = vmatpush.msra.mxu0 0.0
    %219 = vmatpush.msra.mxu0 0.0
    %220 = vmatpush.msra.mxu0 0.0
    %221 = vmatpush.msra.mxu0 0.0
    %222 = vmatpush.msra.mxu0 %v208
    %223 = vmatpush.msra.mxu0 %v206
    %224 = vmatpush.msra.mxu0 %v204
    %225 = vmatpush.msra.mxu0 %v202
    %226 = vmatpush.msra.mxu0 %v200
    %227 = vmatpush.msra.mxu0 %v198
    %228 = vmatpush.msra.mxu0 %v196
    %229 = vmatpush.msra.mxu0 %v194
    %230 = vmatmul.f32.gmra.mxu0 %v212
    %v231 = vpop.f32.mrf.mxu0
    %v232 = vadd.f32 0.0, %v231
    %233 = vdwg.mxu0
    %234 = vmatpush.msra.mxu0 0.0
    %235 = vmatpush.msra.mxu0 0.0
    %236 = vmatpush.msra.mxu0 0.0
    %237 = vmatpush.msra.mxu0 0.0
    %238 = vmatpush.msra.mxu0 0.0
    %239 = vmatpush.msra.mxu0 0.0
    %240 = vmatpush.msra.mxu0 0.0
    %241 = vmatpush.msra.mxu0 0.0
    %242 = vmatpush.msra.mxu0 %v209
    %243 = vmatpush.msra.mxu0 %v207
    %244 = vmatpush.msra.mxu0 %v205
    %245 = vmatpush.msra.mxu0 %v203
    %246 = vmatpush.msra.mxu0 %v201
    %247 = vmatpush.msra.mxu0 %v199
    %248 = vmatpush.msra.mxu0 %v197
    %249 = vmatpush.msra.mxu0 %v195
    %250 = vmatmul.f32.gmra.mxu0 %v212
    %v251 = vpop.f32.mrf.mxu0
    %v252 = vadd.f32 0.0, %v251
    %253 = vdwg.mxu0
    %v254 = vadd.f32 %v190, %v232
    %v255 = vadd.f32 %v191, %v252
    %s256 = smul.u32 0, 2
    %s257 = smul.addr %s256, 8
    %s258 = scalar_lea.vmem [#allocation2], %s257
    %v259 = vld [vmem:[%s258] sm:$0xff]
    %v260 = vld [vmem:[%s258 + $0x8] sm:$0xff]
    %v261 = vld [vmem:[#allocation3] sm:$0xff]
    %v262 = vld [vmem:[#allocation3 + $0x8] sm:$0xff]
    %v263 = vld [vmem:[#allocation3 + $0x10] sm:$0xff]
    %v264 = vld [vmem:[#allocation3 + $0x18] sm:$0xff]
    %v265 = vld [vmem:[#allocation3 + $0x20] sm:$0xff]
    %v266 = vld [vmem:[#allocation3 + $0x28] sm:$0xff]
    %v267 = vld [vmem:[#allocation3 + $0x30] sm:$0xff]
    %v268 = vld [vmem:[#allocation3 + $0x38] sm:$0xff]
    %v269 = vld [vmem:[#allocation3 + $0x40] sm:$0xff]
    %v270 = vld [vmem:[#allocation3 + $0x48] sm:$0xff]
    %v271 = vld [vmem:[#allocation3 + $0x50] sm:$0xff]
    %v272 = vld [vmem:[#allocation3 + $0x58] sm:$0xff]
    %v273 = vld [vmem:[#allocation3 + $0x60] sm:$0xff]
    %v274 = vld [vmem:[#allocation3 + $0x68] sm:$0xff]
    %v275 = vld [vmem:[#allocation3 + $0x70] sm:$0xff]
    %v276 = vld [vmem:[#allocation3 + $0x78] sm:$0xff]
    %277 = vmatpush.msra.mxu0 0.0
    %278 = vmatpush.msra.mxu0 0.0
    %279 = vmatpush.msra.mxu0 0.0
    %280 = vmatpush.msra.mxu0 0.0
    %281 = vmatpush.msra.mxu0 0.0
    %282 = vmatpush.msra.mxu0 0.0
    %283 = vmatpush.msra.mxu0 0.0
    %284 = vmatpush.msra.mxu0 0.0
    %285 = vmatpush.msra.mxu0 %v275
    %286 = vmatpush.msra.mxu0 %v273
    %287 = vmatpush.msra.mxu0 %v271
    %288 = vmatpush.msra.mxu0 %v269
    %289 = vmatpush.msra.mxu0 %v267
    %290 = vmatpush.msra.mxu0 %v265
    %291 = vmatpush.msra.mxu0 %v263
    %292 = vmatpush.msra.mxu0 %v261
    %293 = vmatmul.f32.gmra.mxu0 %v212
    %v294 = vpop.f32.mrf.mxu0
    %v295 = vadd.f32 0.0, %v294
    %296 = vdwg.mxu0
    %297 = vmatpush.msra.mxu0 0.0
    %298 = vmatpush.msra.mxu0 0.0
    %299 = vmatpush.msra.mxu0 0.0
    %300 = vmatpush.msra.mxu0 0.0
    %301 = vmatpush.msra.mxu0 0.0
    %302 = vmatpush.msra.mxu0 0.0
    %303 = vmatpush.msra.mxu0 0.0
    %304 = vmatpush.msra.mxu0 0.0
    %305 = vmatpush.msra.mxu0 %v276
    %306 = vmatpush.msra.mxu0 %v274
    %307 = vmatpush.msra.mxu0 %v272
    %308 = vmatpush.msra.mxu0 %v270
    %309 = vmatpush.msra.mxu0 %v268
    %310 = vmatpush.msra.mxu0 %v266
    %311 = vmatpush.msra.mxu0 %v264
    %312 = vmatpush.msra.mxu0 %v262
    %313 = vmatmul.f32.gmra.mxu0 %v212
    %v314 = vpop.f32.mrf.mxu0
    %v315 = vadd.f32 0.0, %v314
    %316 = vdwg.mxu0
    %v317 = vadd.f32 %v259, %v295
    %v318 = vadd.f32 %v260, %v315
    %v319 = vmul.f32 %v317, 0.5
    %v320 = vtanh.pop %v319
    %v321 = vmul.f32 %v320, 0.5
    %v322 = vadd.f32 %v321, 0.5
    %v323 = vtanh.pop %v318
    %v324 = vmul.f32 %v318, 0.5
    %v325 = vtanh.pop %v324
    %v326 = vmul.f32 %v325, 0.5
    %v327 = vadd.f32 %v326, 0.5
    %v328 = vmul.f32 %v322, 0.0
    %v329 = vmul.f32 %v322, %v323
    %331 = vrot.lane.b32.xlu0 %v329, 64
    %v332 = vpop.permute.xlu0 %331
    %v334 = vadd.f32 %v328, %v332
    %v335 = vtanh.pop %v334
    %v336 = vmul.f32 %v327, %v335
    %v337 = vld [vmem:[#allocation6] sm:$0xff]
    %v338 = vld [vmem:[#allocation6 + $0x8] sm:$0xff]
    %v339 = vld [vmem:[#allocation6 + $0x10] sm:$0xff]
    %v340 = vld [vmem:[#allocation6 + $0x18] sm:$0xff]
    %v341 = vld [vmem:[#allocation6 + $0x20] sm:$0xff]
    %v342 = vld [vmem:[#allocation6 + $0x28] sm:$0xff]
    %v343 = vld [vmem:[#allocation6 + $0x30] sm:$0xff]
    %v344 = vld [vmem:[#allocation6 + $0x38] sm:$0xff]
    %v345 = vld [vmem:[#allocation6 + $0x40] sm:$0xff]
    %v346 = vld [vmem:[#allocation6 + $0x48] sm:$0xff]
    %v347 = vld [vmem:[#allocation6 + $0x50] sm:$0xff]
    %v348 = vld [vmem:[#allocation6 + $0x58] sm:$0xff]
    %v349 = vld [vmem:[#allocation6 + $0x60] sm:$0xff]
    %v350 = vld [vmem:[#allocation6 + $0x68] sm:$0xff]
    %v351 = vld [vmem:[#allocation6 + $0x70] sm:$0xff]
    %v352 = vld [vmem:[#allocation6 + $0x78] sm:$0xff]
    %354 = vrot.lane.b32.xlu0 %v336, 64
    %v355 = vpop.permute.xlu0 %354
    %v356 = vsel %vm210, %v355, 0
    %358 = vmatpush.msra.mxu0 0.0
    %359 = vmatpush.msra.mxu0 0.0
    %360 = vmatpush.msra.mxu0 0.0
    %361 = vmatpush.msra.mxu0 0.0
    %362 = vmatpush.msra.mxu0 0.0
    %363 = vmatpush.msra.mxu0 0.0
    %364 = vmatpush.msra.mxu0 0.0
    %365 = vmatpush.msra.mxu0 0.0
    %366 = vmatpush.msra.mxu0 %v351
    %367 = vmatpush.msra.mxu0 %v349
    %368 = vmatpush.msra.mxu0 %v347
    %369 = vmatpush.msra.mxu0 %v345
    %370 = vmatpush.msra.mxu0 %v343
    %371 = vmatpush.msra.mxu0 %v341
    %372 = vmatpush.msra.mxu0 %v339
    %373 = vmatpush.msra.mxu0 %v337
    %374 = vmatmul.f32.gmra.mxu0 %v356
    %v375 = vpop.f32.mrf.mxu0
    %v376 = vadd.f32 0.0, %v375
    %377 = vdwg.mxu0
    %378 = vmatpush.msra.mxu0 0.0
    %379 = vmatpush.msra.mxu0 0.0
    %380 = vmatpush.msra.mxu0 0.0
    %381 = vmatpush.msra.mxu0 0.0
    %382 = vmatpush.msra.mxu0 0.0
    %383 = vmatpush.msra.mxu0 0.0
    %384 = vmatpush.msra.mxu0 0.0
    %385 = vmatpush.msra.mxu0 0.0
    %386 = vmatpush.msra.mxu0 %v352
    %387 = vmatpush.msra.mxu0 %v350
    %388 = vmatpush.msra.mxu0 %v348
    %389 = vmatpush.msra.mxu0 %v346
    %390 = vmatpush.msra.mxu0 %v344
    %391 = vmatpush.msra.mxu0 %v342
    %392 = vmatpush.msra.mxu0 %v340
    %393 = vmatpush.msra.mxu0 %v338
    %394 = vmatmul.f32.gmra.mxu0 %v356
    %v395 = vpop.f32.mrf.mxu0
    %v396 = vadd.f32 0.0, %v395
    %397 = vdwg.mxu0
    %v398 = vadd.f32 %v254, %v376
    %v399 = vadd.f32 %v255, %v396
    %v400 = vmul.f32 %v398, 0.5
    %v401 = vtanh.pop %v400
    %v402 = vmul.f32 %v401, 0.5
    %v403 = vadd.f32 %v402, 0.5
    %v404 = vtanh.pop %v399
    %v405 = vmul.f32 %v399, 0.5
    %v406 = vtanh.pop %v405
    %v407 = vmul.f32 %v406, 0.5
    %v408 = vadd.f32 %v407, 0.5
    %v409 = vmul.f32 %v403, 0.0
    %v410 = vmul.f32 %v403, %v404
    %412 = vrot.lane.b32.xlu0 %v410, 64
    %v413 = vpop.permute.xlu0 %412
    %v415 = vadd.f32 %v409, %v413
    %v416 = vtanh.pop %v415
    %v417 = vmul.f32 %v408, %v416
    %419 = vrot.lane.b32.xlu0 %v417, 64
    %v420 = vpop.permute.xlu0 %419
    %v421 = vsel %vm210, %v420, 0
    %423 = vmatpush.msra.mxu0 0.0
    %424 = vmatpush.msra.mxu0 0.0
    %425 = vmatpush.msra.mxu0 0.0
    %426 = vmatpush.msra.mxu0 0.0
    %427 = vmatpush.msra.mxu0 0.0
    %428 = vmatpush.msra.mxu0 0.0
    %429 = vmatpush.msra.mxu0 0.0
    %430 = vmatpush.msra.mxu0 0.0
    %431 = vmatpush.msra.mxu0 %v208
    %432 = vmatpush.msra.mxu0 %v206
    %433 = vmatpush.msra.mxu0 %v204
    %434 = vmatpush.msra.mxu0 %v202
    %435 = vmatpush.msra.mxu0 %v200
    %436 = vmatpush.msra.mxu0 %v198
    %437 = vmatpush.msra.mxu0 %v196
    %438 = vmatpush.msra.mxu0 %v194
    %439 = vmatmul.f32.gmra.mxu0 %v421
    %v440 = vpop.f32.mrf.mxu0
    %v441 = vadd.f32 0.0, %v440
    %442 = vdwg.mxu0
    %443 = vmatpush.msra.mxu0 0.0
    %444 = vmatpush.msra.mxu0 0.0
    %445 = vmatpush.msra.mxu0 0.0
    %446 = vmatpush.msra.mxu0 0.0
    %447 = vmatpush.msra.mxu0 0.0
    %448 = vmatpush.msra.mxu0 0.0
    %449 = vmatpush.msra.mxu0 0.0
    %450 = vmatpush.msra.mxu0 0.0
    %451 = vmatpush.msra.mxu0 %v209
    %452 = vmatpush.msra.mxu0 %v207
    %453 = vmatpush.msra.mxu0 %v205
    %454 = vmatpush.msra.mxu0 %v203
    %455 = vmatpush.msra.mxu0 %v201
    %456 = vmatpush.msra.mxu0 %v199
    %457 = vmatpush.msra.mxu0 %v197
    %458 = vmatpush.msra.mxu0 %v195
    %459 = vmatmul.f32.gmra.mxu0 %v421
    %v460 = vpop.f32.mrf.mxu0
    %v461 = vadd.f32 0.0, %v460
    %462 = vdwg.mxu0
    %v463 = vadd.f32 %v190, %v441
    %v464 = vadd.f32 %v191, %v461
    %s465 = smul.u32 1, 2
    %s466 = smul.addr %s465, 8
    %s467 = scalar_lea.vmem [#allocation2], %s466
    %v468 = vld [vmem:[%s467] sm:$0xff]
    %v469 = vld [vmem:[%s467 + $0x8] sm:$0xff]
    %470 = vmatpush.msra.mxu0 0.0
    %471 = vmatpush.msra.mxu0 0.0
    %472 = vmatpush.msra.mxu0 0.0
    %473 = vmatpush.msra.mxu0 0.0
    %474 = vmatpush.msra.mxu0 0.0
    %475 = vmatpush.msra.mxu0 0.0
    %476 = vmatpush.msra.mxu0 0.0
    %477 = vmatpush.msra.mxu0 0.0
    %478 = vmatpush.msra.mxu0 %v275
    %479 = vmatpush.msra.mxu0 %v273
    %480 = vmatpush.msra.mxu0 %v271
    %481 = vmatpush.msra.mxu0 %v269
    %482 = vmatpush.msra.mxu0 %v267
    %483 = vmatpush.msra.mxu0 %v265
    %484 = vmatpush.msra.mxu0 %v263
    %485 = vmatpush.msra.mxu0 %v261
    %486 = vmatmul.f32.gmra.mxu0 %v356
    %v487 = vpop.f32.mrf.mxu0
    %v488 = vadd.f32 0.0, %v487
    %489 = vdwg.mxu0
    %490 = vmatpush.msra.mxu0 0.0
    %491 = vmatpush.msra.mxu0 0.0
    %492 = vmatpush.msra.mxu0 0.0
    %493 = vmatpush.msra.mxu0 0.0
    %494 = vmatpush.msra.mxu0 0.0
    %495 = vmatpush.msra.mxu0 0.0
    %496 = vmatpush.msra.mxu0 0.0
    %497 = vmatpush.msra.mxu0 0.0
    %498 = vmatpush.msra.mxu0 %v276
    %499 = vmatpush.msra.mxu0 %v274
    %500 = vmatpush.msra.mxu0 %v272
    %501 = vmatpush.msra.mxu0 %v270
    %502 = vmatpush.msra.mxu0 %v268
    %503 = vmatpush.msra.mxu0 %v266
    %504 = vmatpush.msra.mxu0 %v264
    %505 = vmatpush.msra.mxu0 %v262
    %506 = vmatmul.f32.gmra.mxu0 %v356
    %v507 = vpop.f32.mrf.mxu0
    %v508 = vadd.f32 0.0, %v507
    %509 = vdwg.mxu0
    %v510 = vadd.f32 %v468, %v488
    %v511 = vadd.f32 %v469, %v508
    %v512 = vmul.f32 %v510, 0.5
    %v513 = vtanh.pop %v512
    %v514 = vmul.f32 %v513, 0.5
    %v515 = vadd.f32 %v514, 0.5
    %v516 = vtanh.pop %v511
    %v517 = vmul.f32 %v511, 0.5
    %v518 = vtanh.pop %v517
    %v519 = vmul.f32 %v518, 0.5
    %v520 = vadd.f32 %v519, 0.5
    %v521 = vmul.f32 %v515, %v334
    %v522 = vmul.f32 %v515, %v516
    %524 = vrot.lane.b32.xlu0 %v522, 64
    %v525 = vpop.permute.xlu0 %524
    %v527 = vadd.f32 %v521, %v525
    %v528 = vtanh.pop %v527
    %v529 = vmul.f32 %v520, %v528
    %531 = vrot.lane.b32.xlu0 %v529, 64
    %v532 = vpop.permute.xlu0 %531
    %v533 = vsel %vm210, %v532, 0
    %535 = vmatpush.msra.mxu0 0.0
    %536 = vmatpush.msra.mxu0 0.0
    %537 = vmatpush.msra.mxu0 0.0
    %538 = vmatpush.msra.mxu0 0.0
    %539 = vmatpush.msra.mxu0 0.0
    %540 = vmatpush.msra.mxu0 0.0
    %541 = vmatpush.msra.mxu0 0.0
    %542 = vmatpush.msra.mxu0 0.0
    %543 = vmatpush.msra.mxu0 %v351
    %544 = vmatpush.msra.mxu0 %v349
    %545 = vmatpush.msra.mxu0 %v347
    %546 = vmatpush.msra.mxu0 %v345
    %547 = vmatpush.msra.mxu0 %v343
    %548 = vmatpush.msra.mxu0 %v341
    %549 = vmatpush.msra.mxu0 %v339
    %550 = vmatpush.msra.mxu0 %v337
    %551 = vmatmul.f32.gmra.mxu0 %v533
    %v552 = vpop.f32.mrf.mxu0
    %v553 = vadd.f32 0.0, %v552
    %554 = vdwg.mxu0
    %555 = vmatpush.msra.mxu0 0.0
    %556 = vmatpush.msra.mxu0 0.0
    %557 = vmatpush.msra.mxu0 0.0
    %558 = vmatpush.msra.mxu0 0.0
    %559 = vmatpush.msra.mxu0 0.0
    %560 = vmatpush.msra.mxu0 0.0
    %561 = vmatpush.msra.mxu0 0.0
    %562 = vmatpush.msra.mxu0 0.0
    %563 = vmatpush.msra.mxu0 %v352
    %564 = vmatpush.msra.mxu0 %v350
    %565 = vmatpush.msra.mxu0 %v348
    %566 = vmatpush.msra.mxu0 %v346
    %567 = vmatpush.msra.mxu0 %v344
    %568 = vmatpush.msra.mxu0 %v342
    %569 = vmatpush.msra.mxu0 %v340
    %570 = vmatpush.msra.mxu0 %v338
    %571 = vmatmul.f32.gmra.mxu0 %v533
    %v572 = vpop.f32.mrf.mxu0
    %v573 = vadd.f32 0.0, %v572
    %574 = vdwg.mxu0
    %v575 = vadd.f32 %v463, %v553
    %v576 = vadd.f32 %v464, %v573
    %v577 = vmul.f32 %v575, 0.5
    %v578 = vtanh.pop %v577
    %v579 = vmul.f32 %v578, 0.5
    %v580 = vadd.f32 %v579, 0.5
    %v581 = vtanh.pop %v576
    %v582 = vmul.f32 %v576, 0.5
    %v583 = vtanh.pop %v582
    %v584 = vmul.f32 %v583, 0.5
    %v585 = vadd.f32 %v584, 0.5
    %v586 = vmul.f32 %v580, %v415
    %v587 = vmul.f32 %v580, %v581
    %589 = vrot.lane.b32.xlu0 %v587, 64
    %v590 = vpop.permute.xlu0 %589
    %v592 = vadd.f32 %v586, %v590
    %v593 = vtanh.pop %v592
    %v594 = vmul.f32 %v585, %v593
    %596 = vrot.lane.b32.xlu0 %v594, 64
    %v597 = vpop.permute.xlu0 %596
    %v598 = vsel %vm210, %v597, 0
    %600 = vmatpush.msra.mxu0 0.0
    %601 = vmatpush.msra.mxu0 0.0
    %602 = vmatpush.msra.mxu0 0.0
    %603 = vmatpush.msra.mxu0 0.0
    %604 = vmatpush.msra.mxu0 0.0
    %605 = vmatpush.msra.mxu0 0.0
    %606 = vmatpush.msra.mxu0 0.0
    %607 = vmatpush.msra.mxu0 0.0
    %608 = vmatpush.msra.mxu0 %v208
    %609 = vmatpush.msra.mxu0 %v206
    %610 = vmatpush.msra.mxu0 %v204
    %611 = vmatpush.msra.mxu0 %v202
    %612 = vmatpush.msra.mxu0 %v200
    %613 = vmatpush.msra.mxu0 %v198
    %614 = vmatpush.msra.mxu0 %v196
    %615 = vmatpush.msra.mxu0 %v194
    %616 = vmatmul.f32.gmra.mxu0 %v598
    %v617 = vpop.f32.mrf.mxu0
    %v618 = vadd.f32 0.0, %v617
    %619 = vdwg.mxu0
    %620 = vmatpush.msra.mxu0 0.0
    %621 = vmatpush.msra.mxu0 0.0
    %622 = vmatpush.msra.mxu0 0.0
    %623 = vmatpush.msra.mxu0 0.0
    %624 = vmatpush.msra.mxu0 0.0
    %625 = vmatpush.msra.mxu0 0.0
    %626 = vmatpush.msra.mxu0 0.0
    %627 = vmatpush.msra.mxu0 0.0
    %628 = vmatpush.msra.mxu0 %v209
    %629 = vmatpush.msra.mxu0 %v207
    %630 = vmatpush.msra.mxu0 %v205
    %631 = vmatpush.msra.mxu0 %v203
    %632 = vmatpush.msra.mxu0 %v201
    %633 = vmatpush.msra.mxu0 %v199
    %634 = vmatpush.msra.mxu0 %v197
    %635 = vmatpush.msra.mxu0 %v195
    %636 = vmatmul.f32.gmra.mxu0 %v598
    %v637 = vpop.f32.mrf.mxu0
    %v638 = vadd.f32 0.0, %v637
    %639 = vdwg.mxu0
    %v640 = vadd.f32 %v190, %v618
    %v641 = vadd.f32 %v191, %v638
    %s642 = smul.u32 2, 2
    %s643 = smul.addr %s642, 8
    %s644 = scalar_lea.vmem [#allocation2], %s643
    %v645 = vld [vmem:[%s644] sm:$0xff]
    %v646 = vld [vmem:[%s644 + $0x8] sm:$0xff]
    %647 = vmatpush.msra.mxu0 0.0
    %648 = vmatpush.msra.mxu0 0.0
    %649 = vmatpush.msra.mxu0 0.0
    %650 = vmatpush.msra.mxu0 0.0
    %651 = vmatpush.msra.mxu0 0.0
    %652 = vmatpush.msra.mxu0 0.0
    %653 = vmatpush.msra.mxu0 0.0
    %654 = vmatpush.msra.mxu0 0.0
    %655 = vmatpush.msra.mxu0 %v275
    %656 = vmatpush.msra.mxu0 %v273
    %657 = vmatpush.msra.mxu0 %v271
    %658 = vmatpush.msra.mxu0 %v269
    %659 = vmatpush.msra.mxu0 %v267
    %660 = vmatpush.msra.mxu0 %v265
    %661 = vmatpush.msra.mxu0 %v263
    %662 = vmatpush.msra.mxu0 %v261
    %663 = vmatmul.f32.gmra.mxu0 %v533
    %v664 = vpop.f32.mrf.mxu0
    %v665 = vadd.f32 0.0, %v664
    %666 = vdwg.mxu0
    %667 = vmatpush.msra.mxu0 0.0
    %668 = vmatpush.msra.mxu0 0.0
    %669 = vmatpush.msra.mxu0 0.0
    %670 = vmatpush.msra.mxu0 0.0
    %671 = vmatpush.msra.mxu0 0.0
    %672 = vmatpush.msra.mxu0 0.0
    %673 = vmatpush.msra.mxu0 0.0
    %674 = vmatpush.msra.mxu0 0.0
    %675 = vmatpush.msra.mxu0 %v276
    %676 = vmatpush.msra.mxu0 %v274
    %677 = vmatpush.msra.mxu0 %v272
    %678 = vmatpush.msra.mxu0 %v270
    %679 = vmatpush.msra.mxu0 %v268
    %680 = vmatpush.msra.mxu0 %v266
    %681 = vmatpush.msra.mxu0 %v264
    %682 = vmatpush.msra.mxu0 %v262
    %683 = vmatmul.f32.gmra.mxu0 %v533
    %v684 = vpop.f32.mrf.mxu0
    %v685 = vadd.f32 0.0, %v684
    %686 = vdwg.mxu0
    %v687 = vadd.f32 %v645, %v665
    %v688 = vadd.f32 %v646, %v685
    %v689 = vmul.f32 %v687, 0.5
    %v690 = vtanh.pop %v689
    %v691 = vmul.f32 %v690, 0.5
    %v692 = vadd.f32 %v691, 0.5
    %v693 = vtanh.pop %v688
    %v694 = vmul.f32 %v688, 0.5
    %v695 = vtanh.pop %v694
    %v696 = vmul.f32 %v695, 0.5
    %v697 = vadd.f32 %v696, 0.5
    %v698 = vmul.f32 %v692, %v527
    %v699 = vmul.f32 %v692, %v693
    %701 = vrot.lane.b32.xlu0 %v699, 64
    %v702 = vpop.permute.xlu0 %701
    %v704 = vadd.f32 %v698, %v702
    %v705 = vtanh.pop %v704
    %v706 = vmul.f32 %v697, %v705
    %708 = vrot.lane.b32.xlu0 %v706, 64
    %v709 = vpop.permute.xlu0 %708
    %v710 = vsel %vm210, %v709, 0
    %712 = vmatpush.msra.mxu0 0.0
    %713 = vmatpush.msra.mxu0 0.0
    %714 = vmatpush.msra.mxu0 0.0
    %715 = vmatpush.msra.mxu0 0.0
    %716 = vmatpush.msra.mxu0 0.0
    %717 = vmatpush.msra.mxu0 0.0
    %718 = vmatpush.msra.mxu0 0.0
    %719 = vmatpush.msra.mxu0 0.0
    %720 = vmatpush.msra.mxu0 %v351
    %721 = vmatpush.msra.mxu0 %v349
    %722 = vmatpush.msra.mxu0 %v347
    %723 = vmatpush.msra.mxu0 %v345
    %724 = vmatpush.msra.mxu0 %v343
    %725 = vmatpush.msra.mxu0 %v341
    %726 = vmatpush.msra.mxu0 %v339
    %727 = vmatpush.msra.mxu0 %v337
    %728 = vmatmul.f32.gmra.mxu0 %v710
    %v729 = vpop.f32.mrf.mxu0
    %v730 = vadd.f32 0.0, %v729
    %731 = vdwg.mxu0
    %732 = vmatpush.msra.mxu0 0.0
    %733 = vmatpush.msra.mxu0 0.0
    %734 = vmatpush.msra.mxu0 0.0
    %735 = vmatpush.msra.mxu0 0.0
    %736 = vmatpush.msra.mxu0 0.0
    %737 = vmatpush.msra.mxu0 0.0
    %738 = vmatpush.msra.mxu0 0.0
    %739 = vmatpush.msra.mxu0 0.0
    %740 = vmatpush.msra.mxu0 %v352
    %741 = vmatpush.msra.mxu0 %v350
    %742 = vmatpush.msra.mxu0 %v348
    %743 = vmatpush.msra.mxu0 %v346
    %744 = vmatpush.msra.mxu0 %v344
    %745 = vmatpush.msra.mxu0 %v342
    %746 = vmatpush.msra.mxu0 %v340
    %747 = vmatpush.msra.mxu0 %v338
    %748 = vmatmul.f32.gmra.mxu0 %v710
    %v749 = vpop.f32.mrf.mxu0
    %v750 = vadd.f32 0.0, %v749
    %751 = vdwg.mxu0
    %v752 = vadd.f32 %v640, %v730
    %v753 = vadd.f32 %v641, %v750
    %v754 = vmul.f32 %v752, 0.5
    %v755 = vtanh.pop %v754
    %v756 = vmul.f32 %v755, 0.5
    %v757 = vadd.f32 %v756, 0.5
    %v758 = vtanh.pop %v753
    %v759 = vmul.f32 %v753, 0.5
    %v760 = vtanh.pop %v759
    %v761 = vmul.f32 %v760, 0.5
    %v762 = vadd.f32 %v761, 0.5
    %v763 = vmul.f32 %v757, %v592
    %v764 = vmul.f32 %v757, %v758
    %766 = vrot.lane.b32.xlu0 %v764, 64
    %v767 = vpop.permute.xlu0 %766
    %v769 = vadd.f32 %v763, %v767
    %v770 = vtanh.pop %v769
    %v771 = vmul.f32 %v762, %v770
    %773 = vrot.lane.b32.xlu0 %v771, 64
    %v774 = vpop.permute.xlu0 %773
    %v775 = vsel %vm210, %v774, 0
    %777 = vmatpush.msra.mxu0 0.0
    %778 = vmatpush.msra.mxu0 0.0
    %779 = vmatpush.msra.mxu0 0.0
    %780 = vmatpush.msra.mxu0 0.0
    %781 = vmatpush.msra.mxu0 0.0
    %782 = vmatpush.msra.mxu0 0.0
    %783 = vmatpush.msra.mxu0 0.0
    %784 = vmatpush.msra.mxu0 0.0
    %785 = vmatpush.msra.mxu0 %v208
    %786 = vmatpush.msra.mxu0 %v206
    %787 = vmatpush.msra.mxu0 %v204
    %788 = vmatpush.msra.mxu0 %v202
    %789 = vmatpush.msra.mxu0 %v200
    %790 = vmatpush.msra.mxu0 %v198
    %791 = vmatpush.msra.mxu0 %v196
    %792 = vmatpush.msra.mxu0 %v194
    %793 = vmatmul.f32.gmra.mxu0 %v775
    %v794 = vpop.f32.mrf.mxu0
    %v795 = vadd.f32 0.0, %v794
    %796 = vdwg.mxu0
    %797 = vmatpush.msra.mxu0 0.0
    %798 = vmatpush.msra.mxu0 0.0
    %799 = vmatpush.msra.mxu0 0.0
    %800 = vmatpush.msra.mxu0 0.0
    %801 = vmatpush.msra.mxu0 0.0
    %802 = vmatpush.msra.mxu0 0.0
    %803 = vmatpush.msra.mxu0 0.0
    %804 = vmatpush.msra.mxu0 0.0
    %805 = vmatpush.msra.mxu0 %v209
    %806 = vmatpush.msra.mxu0 %v207
    %807 = vmatpush.msra.mxu0 %v205
    %808 = vmatpush.msra.mxu0 %v203
    %809 = vmatpush.msra.mxu0 %v201
    %810 = vmatpush.msra.mxu0 %v199
    %811 = vmatpush.msra.mxu0 %v197
    %812 = vmatpush.msra.mxu0 %v195
    %813 = vmatmul.f32.gmra.mxu0 %v775
    %v814 = vpop.f32.mrf.mxu0
    %v815 = vadd.f32 0.0, %v814
    %816 = vdwg.mxu0
    %v817 = vadd.f32 %v190, %v795
    %v818 = vadd.f32 %v191, %v815
    %s819 = smul.u32 3, 2
    %s820 = smul.addr %s819, 8
    %s821 = scalar_lea.vmem [#allocation2], %s820
    %v822 = vld [vmem:[%s821] sm:$0xff]
    %v823 = vld [vmem:[%s821 + $0x8] sm:$0xff]
    %824 = vmatpush.msra.mxu0 0.0
    %825 = vmatpush.msra.mxu0 0.0
    %826 = vmatpush.msra.mxu0 0.0
    %827 = vmatpush.msra.mxu0 0.0
    %828 = vmatpush.msra.mxu0 0.0
    %829 = vmatpush.msra.mxu0 0.0
    %830 = vmatpush.msra.mxu0 0.0
    %831 = vmatpush.msra.mxu0 0.0
    %832 = vmatpush.msra.mxu0 %v275
    %833 = vmatpush.msra.mxu0 %v273
    %834 = vmatpush.msra.mxu0 %v271
    %835 = vmatpush.msra.mxu0 %v269
    %836 = vmatpush.msra.mxu0 %v267
    %837 = vmatpush.msra.mxu0 %v265
    %838 = vmatpush.msra.mxu0 %v263
    %839 = vmatpush.msra.mxu0 %v261
    %840 = vmatmul.f32.gmra.mxu0 %v710
    %v841 = vpop.f32.mrf.mxu0
    %v842 = vadd.f32 0.0, %v841
    %843 = vdwg.mxu0
    %844 = vmatpush.msra.mxu0 0.0
    %845 = vmatpush.msra.mxu0 0.0
    %846 = vmatpush.msra.mxu0 0.0
    %847 = vmatpush.msra.mxu0 0.0
    %848 = vmatpush.msra.mxu0 0.0
    %849 = vmatpush.msra.mxu0 0.0
    %850 = vmatpush.msra.mxu0 0.0
    %851 = vmatpush.msra.mxu0 0.0
    %852 = vmatpush.msra.mxu0 %v276
    %853 = vmatpush.msra.mxu0 %v274
    %854 = vmatpush.msra.mxu0 %v272
    %855 = vmatpush.msra.mxu0 %v270
    %856 = vmatpush.msra.mxu0 %v268
    %857 = vmatpush.msra.mxu0 %v266
    %858 = vmatpush.msra.mxu0 %v264
    %859 = vmatpush.msra.mxu0 %v262
    %860 = vmatmul.f32.gmra.mxu0 %v710
    %v861 = vpop.f32.mrf.mxu0
    %v862 = vadd.f32 0.0, %v861
    %863 = vdwg.mxu0
    %v864 = vadd.f32 %v822, %v842
    %v865 = vadd.f32 %v823, %v862
    %v866 = vmul.f32 %v864, 0.5
    %v867 = vtanh.pop %v866
    %v868 = vmul.f32 %v867, 0.5
    %v869 = vadd.f32 %v868, 0.5
    %v870 = vtanh.pop %v865
    %v871 = vmul.f32 %v865, 0.5
    %v872 = vtanh.pop %v871
    %v873 = vmul.f32 %v872, 0.5
    %v874 = vadd.f32 %v873, 0.5
    %v875 = vmul.f32 %v869, %v704
    %v876 = vmul.f32 %v869, %v870
    %878 = vrot.lane.b32.xlu0 %v876, 64
    %v879 = vpop.permute.xlu0 %878
    %v881 = vadd.f32 %v875, %v879
    %v882 = vtanh.pop %v881
    %v883 = vmul.f32 %v874, %v882
    %885 = vrot.lane.b32.xlu0 %v883, 64
    %v886 = vpop.permute.xlu0 %885
    %v887 = vsel %vm210, %v886, 0
    %889 = vmatpush.msra.mxu0 0.0
    %890 = vmatpush.msra.mxu0 0.0
    %891 = vmatpush.msra.mxu0 0.0
    %892 = vmatpush.msra.mxu0 0.0
    %893 = vmatpush.msra.mxu0 0.0
    %894 = vmatpush.msra.mxu0 0.0
    %895 = vmatpush.msra.mxu0 0.0
    %896 = vmatpush.msra.mxu0 0.0
    %897 = vmatpush.msra.mxu0 %v351
    %898 = vmatpush.msra.mxu0 %v349
    %899 = vmatpush.msra.mxu0 %v347
    %900 = vmatpush.msra.mxu0 %v345
    %901 = vmatpush.msra.mxu0 %v343
    %902 = vmatpush.msra.mxu0 %v341
    %903 = vmatpush.msra.mxu0 %v339
    %904 = vmatpush.msra.mxu0 %v337
    %905 = vmatmul.f32.gmra.mxu0 %v887
    %v906 = vpop.f32.mrf.mxu0
    %v907 = vadd.f32 0.0, %v906
    %908 = vdwg.mxu0
    %909 = vmatpush.msra.mxu0 0.0
    %910 = vmatpush.msra.mxu0 0.0
    %911 = vmatpush.msra.mxu0 0.0
    %912 = vmatpush.msra.mxu0 0.0
    %913 = vmatpush.msra.mxu0 0.0
    %914 = vmatpush.msra.mxu0 0.0
    %915 = vmatpush.msra.mxu0 0.0
    %916 = vmatpush.msra.mxu0 0.0
    %917 = vmatpush.msra.mxu0 %v352
    %918 = vmatpush.msra.mxu0 %v350
    %919 = vmatpush.msra.mxu0 %v348
    %920 = vmatpush.msra.mxu0 %v346
    %921 = vmatpush.msra.mxu0 %v344
    %922 = vmatpush.msra.mxu0 %v342
    %923 = vmatpush.msra.mxu0 %v340
    %924 = vmatpush.msra.mxu0 %v338
    %925 = vmatmul.f32.gmra.mxu0 %v887
    %v926 = vpop.f32.mrf.mxu0
    %v927 = vadd.f32 0.0, %v926
    %928 = vdwg.mxu0
    %v929 = vadd.f32 %v817, %v907
    %v930 = vadd.f32 %v818, %v927
    %v931 = vmul.f32 %v929, 0.5
    %v932 = vtanh.pop %v931
    %v933 = vmul.f32 %v932, 0.5
    %v934 = vadd.f32 %v933, 0.5
    %v935 = vtanh.pop %v930
    %v936 = vmul.f32 %v930, 0.5
    %v937 = vtanh.pop %v936
    %v938 = vmul.f32 %v937, 0.5
    %v939 = vadd.f32 %v938, 0.5
    %v940 = vmul.f32 %v934, %v769
    %v941 = vmul.f32 %v934, %v935
    %943 = vrot.lane.b32.xlu0 %v941, 64
    %v944 = vpop.permute.xlu0 %943
    %v946 = vadd.f32 %v940, %v944
    %v947 = vtanh.pop %v946
    %v948 = vmul.f32 %v939, %v947
    %950 = vrot.lane.b32.xlu0 %v948, 64
    %v951 = vpop.permute.xlu0 %950
    %v952 = vsel %vm210, %v951, 0
    %954 = vmatpush.msra.mxu0 0.0
    %955 = vmatpush.msra.mxu0 0.0
    %956 = vmatpush.msra.mxu0 0.0
    %957 = vmatpush.msra.mxu0 0.0
    %958 = vmatpush.msra.mxu0 0.0
    %959 = vmatpush.msra.mxu0 0.0
    %960 = vmatpush.msra.mxu0 0.0
    %961 = vmatpush.msra.mxu0 0.0
    %962 = vmatpush.msra.mxu0 %v208
    %963 = vmatpush.msra.mxu0 %v206
    %964 = vmatpush.msra.mxu0 %v204
    %965 = vmatpush.msra.mxu0 %v202
    %966 = vmatpush.msra.mxu0 %v200
    %967 = vmatpush.msra.mxu0 %v198
    %968 = vmatpush.msra.mxu0 %v196
    %969 = vmatpush.msra.mxu0 %v194
    %970 = vmatmul.f32.gmra.mxu0 %v952
    %v971 = vpop.f32.mrf.mxu0
    %v972 = vadd.f32 0.0, %v971
    %973 = vdwg.mxu0
    %974 = vmatpush.msra.mxu0 0.0
    %975 = vmatpush.msra.mxu0 0.0
    %976 = vmatpush.msra.mxu0 0.0
    %977 = vmatpush.msra.mxu0 0.0
    %978 = vmatpush.msra.mxu0 0.0
    %979 = vmatpush.msra.mxu0 0.0
    %980 = vmatpush.msra.mxu0 0.0
    %981 = vmatpush.msra.mxu0 0.0
    %982 = vmatpush.msra.mxu0 %v209
    %983 = vmatpush.msra.mxu0 %v207
    %984 = vmatpush.msra.mxu0 %v205
    %985 = vmatpush.msra.mxu0 %v203
    %986 = vmatpush.msra.mxu0 %v201
    %987 = vmatpush.msra.mxu0 %v199
    %988 = vmatpush.msra.mxu0 %v197
    %989 = vmatpush.msra.mxu0 %v195
    %990 = vmatmul.f32.gmra.mxu0 %v952
    %v991 = vpop.f32.mrf.mxu0
    %v992 = vadd.f32 0.0, %v991
    %993 = vdwg.mxu0
    %v994 = vadd.f32 %v190, %v972
    %v995 = vadd.f32 %v191, %v992
    %s996 = smul.u32 4, 2
    %s997 = smul.addr %s996, 8
    %s998 = scalar_lea.vmem [#allocation2], %s997
    %v999 = vld [vmem:[%s998] sm:$0xff]
    %v1000 = vld [vmem:[%s998 + $0x8] sm:$0xff]
    %1001 = vmatpush.msra.mxu0 0.0
    %1002 = vmatpush.msra.mxu0 0.0
    %1003 = vmatpush.msra.mxu0 0.0
    %1004 = vmatpush.msra.mxu0 0.0
    %1005 = vmatpush.msra.mxu0 0.0
    %1006 = vmatpush.msra.mxu0 0.0
    %1007 = vmatpush.msra.mxu0 0.0
    %1008 = vmatpush.msra.mxu0 0.0
    %1009 = vmatpush.msra.mxu0 %v275
    %1010 = vmatpush.msra.mxu0 %v273
    %1011 = vmatpush.msra.mxu0 %v271
    %1012 = vmatpush.msra.mxu0 %v269
    %1013 = vmatpush.msra.mxu0 %v267
    %1014 = vmatpush.msra.mxu0 %v265
    %1015 = vmatpush.msra.mxu0 %v263
    %1016 = vmatpush.msra.mxu0 %v261
    %1017 = vmatmul.f32.gmra.mxu0 %v887
    %v1018 = vpop.f32.mrf.mxu0
    %v1019 = vadd.f32 0.0, %v1018
    %1020 = vdwg.mxu0
    %1021 = vmatpush.msra.mxu0 0.0
    %1022 = vmatpush.msra.mxu0 0.0
    %1023 = vmatpush.msra.mxu0 0.0
    %1024 = vmatpush.msra.mxu0 0.0
    %1025 = vmatpush.msra.mxu0 0.0
    %1026 = vmatpush.msra.mxu0 0.0
    %1027 = vmatpush.msra.mxu0 0.0
    %1028 = vmatpush.msra.mxu0 0.0
    %1029 = vmatpush.msra.mxu0 %v276
    %1030 = vmatpush.msra.mxu0 %v274
    %1031 = vmatpush.msra.mxu0 %v272
    %1032 = vmatpush.msra.mxu0 %v270
    %1033 = vmatpush.msra.mxu0 %v268
    %1034 = vmatpush.msra.mxu0 %v266
    %1035 = vmatpush.msra.mxu0 %v264
    %1036 = vmatpush.msra.mxu0 %v262
    %1037 = vmatmul.f32.gmra.mxu0 %v887
    %v1038 = vpop.f32.mrf.mxu0
    %v1039 = vadd.f32 0.0, %v1038
    %1040 = vdwg.mxu0
    %v1041 = vadd.f32 %v999, %v1019
    %v1042 = vadd.f32 %v1000, %v1039
    %v1043 = vmul.f32 %v1041, 0.5
    %v1044 = vtanh.pop %v1043
    %v1045 = vmul.f32 %v1044, 0.5
    %v1046 = vadd.f32 %v1045, 0.5
    %v1047 = vtanh.pop %v1042
    %v1048 = vmul.f32 %v1042, 0.5
    %v1049 = vtanh.pop %v1048
    %v1050 = vmul.f32 %v1049, 0.5
    %v1051 = vadd.f32 %v1050, 0.5
    %v1052 = vmul.f32 %v1046, %v881
    %v1053 = vmul.f32 %v1046, %v1047
    %1055 = vrot.lane.b32.xlu0 %v1053, 64
    %v1056 = vpop.permute.xlu0 %1055
    %v1058 = vadd.f32 %v1052, %v1056
    %v1059 = vtanh.pop %v1058
    %v1060 = vmul.f32 %v1051, %v1059
    %1062 = vrot.lane.b32.xlu0 %v1060, 64
    %v1063 = vpop.permute.xlu0 %1062
    %v1064 = vsel %vm210, %v1063, 0
    %1066 = vmatpush.msra.mxu0 0.0
    %1067 = vmatpush.msra.mxu0 0.0
    %1068 = vmatpush.msra.mxu0 0.0
    %1069 = vmatpush.msra.mxu0 0.0
    %1070 = vmatpush.msra.mxu0 0.0
    %1071 = vmatpush.msra.mxu0 0.0
    %1072 = vmatpush.msra.mxu0 0.0
    %1073 = vmatpush.msra.mxu0 0.0
    %1074 = vmatpush.msra.mxu0 %v351
    %1075 = vmatpush.msra.mxu0 %v349
    %1076 = vmatpush.msra.mxu0 %v347
    %1077 = vmatpush.msra.mxu0 %v345
    %1078 = vmatpush.msra.mxu0 %v343
    %1079 = vmatpush.msra.mxu0 %v341
    %1080 = vmatpush.msra.mxu0 %v339
    %1081 = vmatpush.msra.mxu0 %v337
    %1082 = vmatmul.f32.gmra.mxu0 %v1064
    %v1083 = vpop.f32.mrf.mxu0
    %v1084 = vadd.f32 0.0, %v1083
    %1085 = vdwg.mxu0
    %1086 = vmatpush.msra.mxu0 0.0
    %1087 = vmatpush.msra.mxu0 0.0
    %1088 = vmatpush.msra.mxu0 0.0
    %1089 = vmatpush.msra.mxu0 0.0
    %1090 = vmatpush.msra.mxu0 0.0
    %1091 = vmatpush.msra.mxu0 0.0
    %1092 = vmatpush.msra.mxu0 0.0
    %1093 = vmatpush.msra.mxu0 0.0
    %1094 = vmatpush.msra.mxu0 %v352
    %1095 = vmatpush.msra.mxu0 %v350
    %1096 = vmatpush.msra.mxu0 %v348
    %1097 = vmatpush.msra.mxu0 %v346
    %1098 = vmatpush.msra.mxu0 %v344
    %1099 = vmatpush.msra.mxu0 %v342
    %1100 = vmatpush.msra.mxu0 %v340
    %1101 = vmatpush.msra.mxu0 %v338
    %1102 = vmatmul.f32.gmra.mxu0 %v1064
    %v1103 = vpop.f32.mrf.mxu0
    %v1104 = vadd.f32 0.0, %v1103
    %1105 = vdwg.mxu0
    %v1106 = vadd.f32 %v994, %v1084
    %v1107 = vadd.f32 %v995, %v1104
    %v1108 = vmul.f32 %v1106, 0.5
    %v1109 = vtanh.pop %v1108
    %v1110 = vmul.f32 %v1109, 0.5
    %v1111 = vadd.f32 %v1110, 0.5
    %v1112 = vtanh.pop %v1107
    %v1113 = vmul.f32 %v1107, 0.5
    %v1114 = vtanh.pop %v1113
    %v1115 = vmul.f32 %v1114, 0.5
    %v1116 = vadd.f32 %v1115, 0.5
    %v1117 = vmul.f32 %v1111, %v946
    %v1118 = vmul.f32 %v1111, %v1112
    %1120 = vrot.lane.b32.xlu0 %v1118, 64
    %v1121 = vpop.permute.xlu0 %1120
    %v1123 = vadd.f32 %v1117, %v1121
    %v1124 = vtanh.pop %v1123
    %v1125 = vmul.f32 %v1116, %v1124
    %1127 = vrot.lane.b32.xlu0 %v1125, 64
    %v1128 = vpop.permute.xlu0 %1127
    %v1129 = vsel %vm210, %v1128, 0
    %1131 = vmatpush.msra.mxu0 0.0
    %1132 = vmatpush.msra.mxu0 0.0
    %1133 = vmatpush.msra.mxu0 0.0
    %1134 = vmatpush.msra.mxu0 0.0
    %1135 = vmatpush.msra.mxu0 0.0
    %1136 = vmatpush.msra.mxu0 0.0
    %1137 = vmatpush.msra.mxu0 0.0
    %1138 = vmatpush.msra.mxu0 0.0
    %1139 = vmatpush.msra.mxu0 %v208
    %1140 = vmatpush.msra.mxu0 %v206
    %1141 = vmatpush.msra.mxu0 %v204
    %1142 = vmatpush.msra.mxu0 %v202
    %1143 = vmatpush.msra.mxu0 %v200
    %1144 = vmatpush.msra.mxu0 %v198
    %1145 = vmatpush.msra.mxu0 %v196
    %1146 = vmatpush.msra.mxu0 %v194
    %1147 = vmatmul.f32.gmra.mxu0 %v1129
    %v1148 = vpop.f32.mrf.mxu0
    %v1149 = vadd.f32 0.0, %v1148
    %1150 = vdwg.mxu0
    %1151 = vmatpush.msra.mxu0 0.0
    %1152 = vmatpush.msra.mxu0 0.0
    %1153 = vmatpush.msra.mxu0 0.0
    %1154 = vmatpush.msra.mxu0 0.0
    %1155 = vmatpush.msra.mxu0 0.0
    %1156 = vmatpush.msra.mxu0 0.0
    %1157 = vmatpush.msra.mxu0 0.0
    %1158 = vmatpush.msra.mxu0 0.0
    %1159 = vmatpush.msra.mxu0 %v209
    %1160 = vmatpush.msra.mxu0 %v207
    %1161 = vmatpush.msra.mxu0 %v205
    %1162 = vmatpush.msra.mxu0 %v203
    %1163 = vmatpush.msra.mxu0 %v201
    %1164 = vmatpush.msra.mxu0 %v199
    %1165 = vmatpush.msra.mxu0 %v197
    %1166 = vmatpush.msra.mxu0 %v195
    %1167 = vmatmul.f32.gmra.mxu0 %v1129
    %v1168 = vpop.f32.mrf.mxu0
    %v1169 = vadd.f32 0.0, %v1168
    %1170 = vdwg.mxu0
    %v1171 = vadd.f32 %v190, %v1149
    %v1172 = vadd.f32 %v191, %v1169
    %s1173 = smul.u32 5, 2
    %s1174 = smul.addr %s1173, 8
    %s1175 = scalar_lea.vmem [#allocation2], %s1174
    %v1176 = vld [vmem:[%s1175] sm:$0xff]
    %v1177 = vld [vmem:[%s1175 + $0x8] sm:$0xff]
    %1178 = vmatpush.msra.mxu0 0.0
    %1179 = vmatpush.msra.mxu0 0.0
    %1180 = vmatpush.msra.mxu0 0.0
    %1181 = vmatpush.msra.mxu0 0.0
    %1182 = vmatpush.msra.mxu0 0.0
    %1183 = vmatpush.msra.mxu0 0.0
    %1184 = vmatpush.msra.mxu0 0.0
    %1185 = vmatpush.msra.mxu0 0.0
    %1186 = vmatpush.msra.mxu0 %v275
    %1187 = vmatpush.msra.mxu0 %v273
    %1188 = vmatpush.msra.mxu0 %v271
    %1189 = vmatpush.msra.mxu0 %v269
    %1190 = vmatpush.msra.mxu0 %v267
    %1191 = vmatpush.msra.mxu0 %v265
    %1192 = vmatpush.msra.mxu0 %v263
    %1193 = vmatpush.msra.mxu0 %v261
    %1194 = vmatmul.f32.gmra.mxu0 %v1064
    %v1195 = vpop.f32.mrf.mxu0
    %v1196 = vadd.f32 0.0, %v1195
    %1197 = vdwg.mxu0
    %1198 = vmatpush.msra.mxu0 0.0
    %1199 = vmatpush.msra.mxu0 0.0
    %1200 = vmatpush.msra.mxu0 0.0
    %1201 = vmatpush.msra.mxu0 0.0
    %1202 = vmatpush.msra.mxu0 0.0
    %1203 = vmatpush.msra.mxu0 0.0
    %1204 = vmatpush.msra.mxu0 0.0
    %1205 = vmatpush.msra.mxu0 0.0
    %1206 = vmatpush.msra.mxu0 %v276
    %1207 = vmatpush.msra.mxu0 %v274
    %1208 = vmatpush.msra.mxu0 %v272
    %1209 = vmatpush.msra.mxu0 %v270
    %1210 = vmatpush.msra.mxu0 %v268
    %1211 = vmatpush.msra.mxu0 %v266
    %1212 = vmatpush.msra.mxu0 %v264
    %1213 = vmatpush.msra.mxu0 %v262
    %1214 = vmatmul.f32.gmra.mxu0 %v1064
    %v1215 = vpop.f32.mrf.mxu0
    %v1216 = vadd.f32 0.0, %v1215
    %1217 = vdwg.mxu0
    %v1218 = vadd.f32 %v1176, %v1196
    %v1219 = vadd.f32 %v1177, %v1216
    %v1220 = vmul.f32 %v1218, 0.5
    %v1221 = vtanh.pop %v1220
    %v1222 = vmul.f32 %v1221, 0.5
    %v1223 = vadd.f32 %v1222, 0.5
    %v1224 = vtanh.pop %v1219
    %v1225 = vmul.f32 %v1219, 0.5
    %v1226 = vtanh.pop %v1225
    %v1227 = vmul.f32 %v1226, 0.5
    %v1228 = vadd.f32 %v1227, 0.5
    %v1229 = vmul.f32 %v1223, %v1058
    %v1230 = vmul.f32 %v1223, %v1224
    %1232 = vrot.lane.b32.xlu0 %v1230, 64
    %v1233 = vpop.permute.xlu0 %1232
    %v1235 = vadd.f32 %v1229, %v1233
    %v1236 = vtanh.pop %v1235
    %v1237 = vmul.f32 %v1228, %v1236
    %1239 = vrot.lane.b32.xlu0 %v1237, 64
    %v1240 = vpop.permute.xlu0 %1239
    %v1241 = vsel %vm210, %v1240, 0
    %1243 = vmatpush.msra.mxu0 0.0
    %1244 = vmatpush.msra.mxu0 0.0
    %1245 = vmatpush.msra.mxu0 0.0
    %1246 = vmatpush.msra.mxu0 0.0
    %1247 = vmatpush.msra.mxu0 0.0
    %1248 = vmatpush.msra.mxu0 0.0
    %1249 = vmatpush.msra.mxu0 0.0
    %1250 = vmatpush.msra.mxu0 0.0
    %1251 = vmatpush.msra.mxu0 %v351
    %1252 = vmatpush.msra.mxu0 %v349
    %1253 = vmatpush.msra.mxu0 %v347
    %1254 = vmatpush.msra.mxu0 %v345
    %1255 = vmatpush.msra.mxu0 %v343
    %1256 = vmatpush.msra.mxu0 %v341
    %1257 = vmatpush.msra.mxu0 %v339
    %1258 = vmatpush.msra.mxu0 %v337
    %1259 = vmatmul.f32.gmra.mxu0 %v1241
    %v1260 = vpop.f32.mrf.mxu0
    %v1261 = vadd.f32 0.0, %v1260
    %1262 = vdwg.mxu0
    %1263 = vmatpush.msra.mxu0 0.0
    %1264 = vmatpush.msra.mxu0 0.0
    %1265 = vmatpush.msra.mxu0 0.0
    %1266 = vmatpush.msra.mxu0 0.0
    %1267 = vmatpush.msra.mxu0 0.0
    %1268 = vmatpush.msra.mxu0 0.0
    %1269 = vmatpush.msra.mxu0 0.0
    %1270 = vmatpush.msra.mxu0 0.0
    %1271 = vmatpush.msra.mxu0 %v352
    %1272 = vmatpush.msra.mxu0 %v350
    %1273 = vmatpush.msra.mxu0 %v348
    %1274 = vmatpush.msra.mxu0 %v346
    %1275 = vmatpush.msra.mxu0 %v344
    %1276 = vmatpush.msra.mxu0 %v342
    %1277 = vmatpush.msra.mxu0 %v340
    %1278 = vmatpush.msra.mxu0 %v338
    %1279 = vmatmul.f32.gmra.mxu0 %v1241
    %v1280 = vpop.f32.mrf.mxu0
    %v1281 = vadd.f32 0.0, %v1280
    %1282 = vdwg.mxu0
    %v1283 = vadd.f32 %v1171, %v1261
    %v1284 = vadd.f32 %v1172, %v1281
    %v1285 = vmul.f32 %v1283, 0.5
    %v1286 = vtanh.pop %v1285
    %v1287 = vmul.f32 %v1286, 0.5
    %v1288 = vadd.f32 %v1287, 0.5
    %v1289 = vtanh.pop %v1284
    %v1290 = vmul.f32 %v1284, 0.5
    %v1291 = vtanh.pop %v1290
    %v1292 = vmul.f32 %v1291, 0.5
    %v1293 = vadd.f32 %v1292, 0.5
    %v1294 = vmul.f32 %v1288, %v1123
    %v1295 = vmul.f32 %v1288, %v1289
    %1297 = vrot.lane.b32.xlu0 %v1295, 64
    %v1298 = vpop.permute.xlu0 %1297
    %v1300 = vadd.f32 %v1294, %v1298
    %v1301 = vtanh.pop %v1300
    %v1302 = vmul.f32 %v1293, %v1301
    %1304 = vrot.lane.b32.xlu0 %v1302, 64
    %v1305 = vpop.permute.xlu0 %1304
    %v1306 = vsel %vm210, %v1305, 0
    %1308 = vmatpush.msra.mxu0 0.0
    %1309 = vmatpush.msra.mxu0 0.0
    %1310 = vmatpush.msra.mxu0 0.0
    %1311 = vmatpush.msra.mxu0 0.0
    %1312 = vmatpush.msra.mxu0 0.0
    %1313 = vmatpush.msra.mxu0 0.0
    %1314 = vmatpush.msra.mxu0 0.0
    %1315 = vmatpush.msra.mxu0 0.0
    %1316 = vmatpush.msra.mxu0 %v208
    %1317 = vmatpush.msra.mxu0 %v206
    %1318 = vmatpush.msra.mxu0 %v204
    %1319 = vmatpush.msra.mxu0 %v202
    %1320 = vmatpush.msra.mxu0 %v200
    %1321 = vmatpush.msra.mxu0 %v198
    %1322 = vmatpush.msra.mxu0 %v196
    %1323 = vmatpush.msra.mxu0 %v194
    %1324 = vmatmul.f32.gmra.mxu0 %v1306
    %v1325 = vpop.f32.mrf.mxu0
    %v1326 = vadd.f32 0.0, %v1325
    %1327 = vdwg.mxu0
    %1328 = vmatpush.msra.mxu0 0.0
    %1329 = vmatpush.msra.mxu0 0.0
    %1330 = vmatpush.msra.mxu0 0.0
    %1331 = vmatpush.msra.mxu0 0.0
    %1332 = vmatpush.msra.mxu0 0.0
    %1333 = vmatpush.msra.mxu0 0.0
    %1334 = vmatpush.msra.mxu0 0.0
    %1335 = vmatpush.msra.mxu0 0.0
    %1336 = vmatpush.msra.mxu0 %v209
    %1337 = vmatpush.msra.mxu0 %v207
    %1338 = vmatpush.msra.mxu0 %v205
    %1339 = vmatpush.msra.mxu0 %v203
    %1340 = vmatpush.msra.mxu0 %v201
    %1341 = vmatpush.msra.mxu0 %v199
    %1342 = vmatpush.msra.mxu0 %v197
    %1343 = vmatpush.msra.mxu0 %v195
    %1344 = vmatmul.f32.gmra.mxu0 %v1306
    %v1345 = vpop.f32.mrf.mxu0
    %v1346 = vadd.f32 0.0, %v1345
    %1347 = vdwg.mxu0
    %v1348 = vadd.f32 %v190, %v1326
    %v1349 = vadd.f32 %v191, %v1346
    %s1350 = smul.u32 6, 2
    %s1351 = smul.addr %s1350, 8
    %s1352 = scalar_lea.vmem [#allocation2], %s1351
    %v1353 = vld [vmem:[%s1352] sm:$0xff]
    %v1354 = vld [vmem:[%s1352 + $0x8] sm:$0xff]
    %1355 = vmatpush.msra.mxu0 0.0
    %1356 = vmatpush.msra.mxu0 0.0
    %1357 = vmatpush.msra.mxu0 0.0
    %1358 = vmatpush.msra.mxu0 0.0
    %1359 = vmatpush.msra.mxu0 0.0
    %1360 = vmatpush.msra.mxu0 0.0
    %1361 = vmatpush.msra.mxu0 0.0
    %1362 = vmatpush.msra.mxu0 0.0
    %1363 = vmatpush.msra.mxu0 %v275
    %1364 = vmatpush.msra.mxu0 %v273
    %1365 = vmatpush.msra.mxu0 %v271
    %1366 = vmatpush.msra.mxu0 %v269
    %1367 = vmatpush.msra.mxu0 %v267
    %1368 = vmatpush.msra.mxu0 %v265
    %1369 = vmatpush.msra.mxu0 %v263
    %1370 = vmatpush.msra.mxu0 %v261
    %1371 = vmatmul.f32.gmra.mxu0 %v1241
    %v1372 = vpop.f32.mrf.mxu0
    %v1373 = vadd.f32 0.0, %v1372
    %1374 = vdwg.mxu0
    %1375 = vmatpush.msra.mxu0 0.0
    %1376 = vmatpush.msra.mxu0 0.0
    %1377 = vmatpush.msra.mxu0 0.0
    %1378 = vmatpush.msra.mxu0 0.0
    %1379 = vmatpush.msra.mxu0 0.0
    %1380 = vmatpush.msra.mxu0 0.0
    %1381 = vmatpush.msra.mxu0 0.0
    %1382 = vmatpush.msra.mxu0 0.0
    %1383 = vmatpush.msra.mxu0 %v276
    %1384 = vmatpush.msra.mxu0 %v274
    %1385 = vmatpush.msra.mxu0 %v272
    %1386 = vmatpush.msra.mxu0 %v270
    %1387 = vmatpush.msra.mxu0 %v268
    %1388 = vmatpush.msra.mxu0 %v266
    %1389 = vmatpush.msra.mxu0 %v264
    %1390 = vmatpush.msra.mxu0 %v262
    %1391 = vmatmul.f32.gmra.mxu0 %v1241
    %v1392 = vpop.f32.mrf.mxu0
    %v1393 = vadd.f32 0.0, %v1392
    %1394 = vdwg.mxu0
    %v1395 = vadd.f32 %v1353, %v1373
    %v1396 = vadd.f32 %v1354, %v1393
    %v1397 = vmul.f32 %v1395, 0.5
    %v1398 = vtanh.pop %v1397
    %v1399 = vmul.f32 %v1398, 0.5
    %v1400 = vadd.f32 %v1399, 0.5
    %v1401 = vtanh.pop %v1396
    %v1402 = vmul.f32 %v1396, 0.5
    %v1403 = vtanh.pop %v1402
    %v1404 = vmul.f32 %v1403, 0.5
    %v1405 = vadd.f32 %v1404, 0.5
    %v1406 = vmul.f32 %v1400, %v1235
    %v1407 = vmul.f32 %v1400, %v1401
    %1409 = vrot.lane.b32.xlu0 %v1407, 64
    %v1410 = vpop.permute.xlu0 %1409
    %v1412 = vadd.f32 %v1406, %v1410
    %v1413 = vtanh.pop %v1412
    %v1414 = vmul.f32 %v1405, %v1413
    %1416 = vrot.lane.b32.xlu0 %v1414, 64
    %v1417 = vpop.permute.xlu0 %1416
    %v1418 = vsel %vm210, %v1417, 0
    %1420 = vmatpush.msra.mxu0 0.0
    %1421 = vmatpush.msra.mxu0 0.0
    %1422 = vmatpush.msra.mxu0 0.0
    %1423 = vmatpush.msra.mxu0 0.0
    %1424 = vmatpush.msra.mxu0 0.0
    %1425 = vmatpush.msra.mxu0 0.0
    %1426 = vmatpush.msra.mxu0 0.0
    %1427 = vmatpush.msra.mxu0 0.0
    %1428 = vmatpush.msra.mxu0 %v351
    %1429 = vmatpush.msra.mxu0 %v349
    %1430 = vmatpush.msra.mxu0 %v347
    %1431 = vmatpush.msra.mxu0 %v345
    %1432 = vmatpush.msra.mxu0 %v343
    %1433 = vmatpush.msra.mxu0 %v341
    %1434 = vmatpush.msra.mxu0 %v339
    %1435 = vmatpush.msra.mxu0 %v337
    %1436 = vmatmul.f32.gmra.mxu0 %v1418
    %v1437 = vpop.f32.mrf.mxu0
    %v1438 = vadd.f32 0.0, %v1437
    %1439 = vdwg.mxu0
    %1440 = vmatpush.msra.mxu0 0.0
    %1441 = vmatpush.msra.mxu0 0.0
    %1442 = vmatpush.msra.mxu0 0.0
    %1443 = vmatpush.msra.mxu0 0.0
    %1444 = vmatpush.msra.mxu0 0.0
    %1445 = vmatpush.msra.mxu0 0.0
    %1446 = vmatpush.msra.mxu0 0.0
    %1447 = vmatpush.msra.mxu0 0.0
    %1448 = vmatpush.msra.mxu0 %v352
    %1449 = vmatpush.msra.mxu0 %v350
    %1450 = vmatpush.msra.mxu0 %v348
    %1451 = vmatpush.msra.mxu0 %v346
    %1452 = vmatpush.msra.mxu0 %v344
    %1453 = vmatpush.msra.mxu0 %v342
    %1454 = vmatpush.msra.mxu0 %v340
    %1455 = vmatpush.msra.mxu0 %v338
    %1456 = vmatmul.f32.gmra.mxu0 %v1418
    %v1457 = vpop.f32.mrf.mxu0
    %v1458 = vadd.f32 0.0, %v1457
    %1459 = vdwg.mxu0
    %v1460 = vadd.f32 %v1348, %v1438
    %v1461 = vadd.f32 %v1349, %v1458
    %v1462 = vmul.f32 %v1460, 0.5
    %v1463 = vtanh.pop %v1462
    %v1464 = vmul.f32 %v1463, 0.5
    %v1465 = vadd.f32 %v1464, 0.5
    %v1466 = vtanh.pop %v1461
    %v1467 = vmul.f32 %v1461, 0.5
    %v1468 = vtanh.pop %v1467
    %v1469 = vmul.f32 %v1468, 0.5
    %v1470 = vadd.f32 %v1469, 0.5
    %v1471 = vmul.f32 %v1465, %v1300
    %v1472 = vmul.f32 %v1465, %v1466
    %1474 = vrot.lane.b32.xlu0 %v1472, 64
    %v1475 = vpop.permute.xlu0 %1474
    %v1477 = vadd.f32 %v1471, %v1475
    %v1478 = vtanh.pop %v1477
    %v1479 = vmul.f32 %v1470, %v1478
    %1481 = vrot.lane.b32.xlu0 %v1479, 64
    %v1482 = vpop.permute.xlu0 %1481
    %v1483 = vsel %vm210, %v1482, 0
    %1485 = vmatpush.msra.mxu0 0.0
    %1486 = vmatpush.msra.mxu0 0.0
    %1487 = vmatpush.msra.mxu0 0.0
    %1488 = vmatpush.msra.mxu0 0.0
    %1489 = vmatpush.msra.mxu0 0.0
    %1490 = vmatpush.msra.mxu0 0.0
    %1491 = vmatpush.msra.mxu0 0.0
    %1492 = vmatpush.msra.mxu0 0.0
    %1493 = vmatpush.msra.mxu0 %v208
    %1494 = vmatpush.msra.mxu0 %v206
    %1495 = vmatpush.msra.mxu0 %v204
    %1496 = vmatpush.msra.mxu0 %v202
    %1497 = vmatpush.msra.mxu0 %v200
    %1498 = vmatpush.msra.mxu0 %v198
    %1499 = vmatpush.msra.mxu0 %v196
    %1500 = vmatpush.msra.mxu0 %v194
    %1501 = vmatmul.f32.gmra.mxu0 %v1483
    %v1502 = vpop.f32.mrf.mxu0
    %v1503 = vadd.f32 0.0, %v1502
    %1504 = vdwg.mxu0
    %1505 = vmatpush.msra.mxu0 0.0
    %1506 = vmatpush.msra.mxu0 0.0
    %1507 = vmatpush.msra.mxu0 0.0
    %1508 = vmatpush.msra.mxu0 0.0
    %1509 = vmatpush.msra.mxu0 0.0
    %1510 = vmatpush.msra.mxu0 0.0
    %1511 = vmatpush.msra.mxu0 0.0
    %1512 = vmatpush.msra.mxu0 0.0
    %1513 = vmatpush.msra.mxu0 %v209
    %1514 = vmatpush.msra.mxu0 %v207
    %1515 = vmatpush.msra.mxu0 %v205
    %1516 = vmatpush.msra.mxu0 %v203
    %1517 = vmatpush.msra.mxu0 %v201
    %1518 = vmatpush.msra.mxu0 %v199
    %1519 = vmatpush.msra.mxu0 %v197
    %1520 = vmatpush.msra.mxu0 %v195
    %1521 = vmatmul.f32.gmra.mxu0 %v1483
    %v1522 = vpop.f32.mrf.mxu0
    %v1523 = vadd.f32 0.0, %v1522
    %1524 = vdwg.mxu0
    %v1525 = vadd.f32 %v190, %v1503
    %v1526 = vadd.f32 %v191, %v1523
    %s1527 = smul.u32 7, 2
    %s1528 = smul.addr %s1527, 8
    %s1529 = scalar_lea.vmem [#allocation2], %s1528
    %v1530 = vld [vmem:[%s1529] sm:$0xff]
    %v1531 = vld [vmem:[%s1529 + $0x8] sm:$0xff]
    %1532 = vmatpush.msra.mxu0 0.0
    %1533 = vmatpush.msra.mxu0 0.0
    %1534 = vmatpush.msra.mxu0 0.0
    %1535 = vmatpush.msra.mxu0 0.0
    %1536 = vmatpush.msra.mxu0 0.0
    %1537 = vmatpush.msra.mxu0 0.0
    %1538 = vmatpush.msra.mxu0 0.0
    %1539 = vmatpush.msra.mxu0 0.0
    %1540 = vmatpush.msra.mxu0 %v275
    %1541 = vmatpush.msra.mxu0 %v273
    %1542 = vmatpush.msra.mxu0 %v271
    %1543 = vmatpush.msra.mxu0 %v269
    %1544 = vmatpush.msra.mxu0 %v267
    %1545 = vmatpush.msra.mxu0 %v265
    %1546 = vmatpush.msra.mxu0 %v263
    %1547 = vmatpush.msra.mxu0 %v261
    %1548 = vmatmul.f32.gmra.mxu0 %v1418
    %v1549 = vpop.f32.mrf.mxu0
    %v1550 = vadd.f32 0.0, %v1549
    %1551 = vdwg.mxu0
    %1552 = vmatpush.msra.mxu0 0.0
    %1553 = vmatpush.msra.mxu0 0.0
    %1554 = vmatpush.msra.mxu0 0.0
    %1555 = vmatpush.msra.mxu0 0.0
    %1556 = vmatpush.msra.mxu0 0.0
    %1557 = vmatpush.msra.mxu0 0.0
    %1558 = vmatpush.msra.mxu0 0.0
    %1559 = vmatpush.msra.mxu0 0.0
    %1560 = vmatpush.msra.mxu0 %v276
    %1561 = vmatpush.msra.mxu0 %v274
    %1562 = vmatpush.msra.mxu0 %v272
    %1563 = vmatpush.msra.mxu0 %v270
    %1564 = vmatpush.msra.mxu0 %v268
    %1565 = vmatpush.msra.mxu0 %v266
    %1566 = vmatpush.msra.mxu0 %v264
    %1567 = vmatpush.msra.mxu0 %v262
    %1568 = vmatmul.f32.gmra.mxu0 %v1418
    %v1569 = vpop.f32.mrf.mxu0
    %v1570 = vadd.f32 0.0, %v1569
    %1571 = vdwg.mxu0
    %v1572 = vadd.f32 %v1530, %v1550
    %v1573 = vadd.f32 %v1531, %v1570
    %v1574 = vmul.f32 %v1572, 0.5
    %v1575 = vtanh.pop %v1574
    %v1576 = vmul.f32 %v1575, 0.5
    %v1577 = vadd.f32 %v1576, 0.5
    %v1578 = vtanh.pop %v1573
    %v1579 = vmul.f32 %v1573, 0.5
    %v1580 = vtanh.pop %v1579
    %v1581 = vmul.f32 %v1580, 0.5
    %v1582 = vadd.f32 %v1581, 0.5
    %v1583 = vmul.f32 %v1577, %v1412
    %v1584 = vmul.f32 %v1577, %v1578
    %1586 = vrot.lane.b32.xlu0 %v1584, 64
    %v1587 = vpop.permute.xlu0 %1586
    %v1589 = vadd.f32 %v1583, %v1587
    %v1590 = vtanh.pop %v1589
    %v1591 = vmul.f32 %v1582, %v1590
    %1593 = vrot.lane.b32.xlu0 %v1591, 64
    %v1594 = vpop.permute.xlu0 %1593
    %v1595 = vsel %vm210, %v1594, 0
    %1597 = vmatpush.msra.mxu0 0.0
    %1598 = vmatpush.msra.mxu0 0.0
    %1599 = vmatpush.msra.mxu0 0.0
    %1600 = vmatpush.msra.mxu0 0.0
    %1601 = vmatpush.msra.mxu0 0.0
    %1602 = vmatpush.msra.mxu0 0.0
    %1603 = vmatpush.msra.mxu0 0.0
    %1604 = vmatpush.msra.mxu0 0.0
    %1605 = vmatpush.msra.mxu0 %v351
    %1606 = vmatpush.msra.mxu0 %v349
    %1607 = vmatpush.msra.mxu0 %v347
    %1608 = vmatpush.msra.mxu0 %v345
    %1609 = vmatpush.msra.mxu0 %v343
    %1610 = vmatpush.msra.mxu0 %v341
    %1611 = vmatpush.msra.mxu0 %v339
    %1612 = vmatpush.msra.mxu0 %v337
    %1613 = vmatmul.f32.gmra.mxu0 %v1595
    %v1614 = vpop.f32.mrf.mxu0
    %v1615 = vadd.f32 0.0, %v1614
    %1616 = vdwg.mxu0
    %1617 = vmatpush.msra.mxu0 0.0
    %1618 = vmatpush.msra.mxu0 0.0
    %1619 = vmatpush.msra.mxu0 0.0
    %1620 = vmatpush.msra.mxu0 0.0
    %1621 = vmatpush.msra.mxu0 0.0
    %1622 = vmatpush.msra.mxu0 0.0
    %1623 = vmatpush.msra.mxu0 0.0
    %1624 = vmatpush.msra.mxu0 0.0
    %1625 = vmatpush.msra.mxu0 %v352
    %1626 = vmatpush.msra.mxu0 %v350
    %1627 = vmatpush.msra.mxu0 %v348
    %1628 = vmatpush.msra.mxu0 %v346
    %1629 = vmatpush.msra.mxu0 %v344
    %1630 = vmatpush.msra.mxu0 %v342
    %1631 = vmatpush.msra.mxu0 %v340
    %1632 = vmatpush.msra.mxu0 %v338
    %1633 = vmatmul.f32.gmra.mxu0 %v1595
    %v1634 = vpop.f32.mrf.mxu0
    %v1635 = vadd.f32 0.0, %v1634
    %1636 = vdwg.mxu0
    %v1637 = vadd.f32 %v1525, %v1615
    %v1638 = vadd.f32 %v1526, %v1635
    %v1639 = vmul.f32 %v1637, 0.5
    %v1640 = vtanh.pop %v1639
    %v1641 = vmul.f32 %v1640, 0.5
    %v1642 = vadd.f32 %v1641, 0.5
    %v1643 = vtanh.pop %v1638
    %v1644 = vmul.f32 %v1638, 0.5
    %v1645 = vtanh.pop %v1644
    %v1646 = vmul.f32 %v1645, 0.5
    %v1647 = vadd.f32 %v1646, 0.5
    %v1648 = vmul.f32 %v1642, %v1477
    %v1649 = vmul.f32 %v1642, %v1643
    %1651 = vrot.lane.b32.xlu0 %v1649, 64
    %v1652 = vpop.permute.xlu0 %1651
    %v1654 = vadd.f32 %v1648, %v1652
    %v1655 = vtanh.pop %v1654
    %v1656 = vmul.f32 %v1647, %v1655
    %v1657 = vld [vmem:[%s7] sm:$0xff]
    %v1658 = vld [vmem:[%s7 + $0x8] sm:$0xff]
    %v1659 = vld [vmem:[%s7 + $0x10] sm:$0xff]
    %v1660 = vld [vmem:[%s7 + $0x18] sm:$0xff]
    %v1661 = vld [vmem:[%s7 + $0x20] sm:$0xff]
    %v1662 = vld [vmem:[%s7 + $0x28] sm:$0xff]
    %v1663 = vld [vmem:[%s7 + $0x30] sm:$0xff]
    %v1664 = vld [vmem:[%s7 + $0x38] sm:$0xff]
    %v1665 = vld [vmem:[%s8] sm:$0x1]
    %v1667 = vperm.slane %v1665, 0
    %1670 = vrot.lane.b32.xlu0 %v1656, 64
    %v1671 = vpop.permute.xlu0 %1670
    %v1672 = vsel %vm210, %v1671, 0
    %1674 = vmatpush.msra.mxu0 0.0
    %1675 = vmatpush.msra.mxu0 0.0
    %1676 = vmatpush.msra.mxu0 0.0
    %1677 = vmatpush.msra.mxu0 0.0
    %1678 = vmatpush.msra.mxu0 0.0
    %1679 = vmatpush.msra.mxu0 0.0
    %1680 = vmatpush.msra.mxu0 0.0
    %1681 = vmatpush.msra.mxu0 0.0
    %1682 = vmatpush.msra.mxu0 %v1664
    %1683 = vmatpush.msra.mxu0 %v1663
    %1684 = vmatpush.msra.mxu0 %v1662
    %1685 = vmatpush.msra.mxu0 %v1661
    %1686 = vmatpush.msra.mxu0 %v1660
    %1687 = vmatpush.msra.mxu0 %v1659
    %1688 = vmatpush.msra.mxu0 %v1658
    %1689 = vmatpush.msra.mxu0 %v1657
    %1690 = vmatmul.f32.gmra.mxu0 %v1672
    %v1691 = vpop.f32.mrf.mxu0
    %v1692 = vadd.f32 %v1667, %v1691
    %1693 = vdwg.mxu0
    %1694 = vst [vmem:[#allocation9] sm:$0xff] %v1692
    // Predicated region
    $region50: #{tpu_custom_call.1} parent=1 // pred_check
      _
    $region51: #{tpu_custom_call.1} parent=1 // pred_check_branch
      %1696 = sbr.rel (0) target = $region53
    $region52: #{tpu_custom_call.1} parent=1 // pred_region
      %1698 = vsyncadd [#allocation5], 0
      %s1700 = sshll.u32 [#allocation9], 4
      %s1701 = int_to_ptr.vmem [resolvable:$true] %s1700
      %s1702 = sshll.u32 %s9, 4
      %s1703 = int_to_ptr.hbm [resolvable:$true] %s1702
      %1705 = dma.vmem_to_hbm [thread:$0]  %s1701, 128, %s1703, [#allocation5]
    $region53: #{tpu_custom_call.1} parent=1 // pred_fallthru
      _
    // Predicated region
    $region54: #{tpu_custom_call.1} parent=1 // pred_check
      _
    $region55: #{tpu_custom_call.1} parent=1 // pred_check_branch
      %1707 = sbr.rel (0) target = $region57
    $region56: #{tpu_custom_call.1} parent=1 // pred_region
      %1709 = dma.done [#allocation5], 128
    $region57: #{tpu_custom_call.1} parent=1 // pred_fallthru
      _
    %1710 = vsyncpa [#allocation4], 1
    %1711 = vsyncpa [#allocation7], 1
    %1712 = vsyncpa [#allocation5], 1

</llo_original>
